<compile_context>
chip_gen: v7x
topology: tpu7x:2x2x1
jax: 0.10.0
libtpu: 0.0.40
codegen_flags: <defaults>
</compile_context>

<pallas_src>
import numpy as np
import jax
import jax.numpy as jnp
from jax import lax
from jax.experimental import pallas as pl
from jax.experimental.pallas import tpu as pltpu


def _separable_components(kernel):
    """Concrete (1,1,k,k) conv kernel -> list of rank-1 (col_taps, row_taps)."""
    # TODO(synk): support traced (non-concrete) conv kernels (SVD needs concrete values).
    kf = np.asarray(jax.device_get(kernel), dtype=np.float64)
    assert kf.ndim == 4 and kf.shape[0] == 1 and kf.shape[1] == 1, "1-channel conv kernel expected"
    ksz = int(kf.shape[-1])
    assert kf.shape[-2] == ksz, "square conv kernel expected"
    assert ksz % 2 == 1, "odd kernel size required for 'same' conv semantics"
    k2d = kf.reshape(ksz, ksz)
    u, s, vt = np.linalg.svd(k2d)
    comps = []
    if s[0] > 0.0:
        for r in range(ksz):
            if s[r] > s[0] * 1e-6:        # Gaussian kernels are rank-1 -> a single component
                comps.append((u[:, r] * s[r], vt[r, :]))
    return ksz, comps


def _build_lr_matrices(H, W, Hin, Win, Rh, Rw, kernel):
    """Fused pool-compaction + separable-'same'-conv operators.

    smoothed = sum_r L[r] @ win_max_full @ R[r], where
      win_max_full[i, j] = max over the Rh x Rw window whose top-left corner is (i, j),
      L[r] = A_r(H,H; vertical conv taps on the band) @ Srow(H,Hin; 0/1 row compaction),
      R[r] = Scol(Win,W; 0/1 lane compaction) @ B_r(W,W; horizontal conv taps on band).
    The band structure of A/B supplies the zero padding of F.conv2d(..., padding=k//2).
    """
    srow = np.zeros((H, Hin), np.float64)
    srow[np.arange(H), np.arange(H) * Rh] = 1.0
    scol = np.zeros((Win, W), np.float64)
    scol[np.arange(W) * Rw, np.arange(W)] = 1.0

    if kernel is None:
        comps = [(np.ones((1,)), np.ones((1,)))]                 # identity "conv"
    else:
        _, comps = _separable_components(kernel)
        if not comps:                                            # all-zero kernel -> conv is 0
            return (np.zeros((1, H, Hin), np.float32),
                    np.zeros((1, Win, W), np.float32))

    Ls, Rs = [], []
    for col_taps, row_taps in comps:
        ksz = len(col_taps)
        pad = (ksz - 1) // 2
        A = np.zeros((H, H), np.float64)                         # A[i, i'] = col[i' - i + pad]
        B = np.zeros((W, W), np.float64)                         # B[j', j] = row[j' - j + pad]
        for d in range(-pad, pad + 1):
            ii = np.arange(max(0, -d), min(H, H - d))
            A[ii, ii + d] = col_taps[d + pad]
            jj = np.arange(max(0, -d), min(W, W - d))
            B[jj + d, jj] = row_taps[d + pad]
        Ls.append(A @ srow)                                      # (H, Hin)
        Rs.append(scol @ B)                                      # (Win, W)
    return np.stack(Ls).astype(np.float32), np.stack(Rs).astype(np.float32)


def _make_gmse_kernel(H, W, Hin, Win, Rh, Rw, Nb, nr):
    def gmse_kernel(l_ref, r_ref, x_ref, t_ref, out_ref):
        def one_image(i, acc):
            t = t_ref[i].astype(jnp.float32)                     # (Hin, Win), contiguous load
            # adaptive_max_pool2d windows: (Rh-1) sublane rolls + (Rw-1) lane rolls (XLU).
            # pltpu.roll needs non-negative shifts; shift = size - k rotates element
            # (row/col + k) into position (row/col).  The circular wrap is harmless
            # because only rows h*Rh / lanes w*Rw are selected by the compaction
            # matmuls below (the divisible-pool case is asserted in the wrapper).
            rmax = t
            for a in range(1, Rh):
                rmax = jnp.maximum(rmax, pltpu.roll(t, shift=Hin - a, axis=0))
            wmax = rmax
            for b in range(1, Rw):
                wmax = jnp.maximum(wmax, pltpu.roll(rmax, shift=Win - b, axis=1))
            # Pool compaction + separable 'same' conv fused into two MXU matmuls per
            # rank component (exactly one component for Gaussian kernels / kernel=None).
            sm = jnp.zeros((H, W), jnp.float32)
            for r in range(nr):
                lhs = jnp.dot(l_ref[r], wmax,
                              preferred_element_type=jnp.float32,
                              precision=lax.Precision.HIGHEST)   # (H, Win)
                sm = sm + jnp.dot(lhs, r_ref[r],
                                  preferred_element_type=jnp.float32,
                                  precision=lax.Precision.HIGHEST)  # (H, W)
            d = x_ref[i].astype(jnp.float32) - sm
            part = jnp.sum(d * d, axis=1, keepdims=True)         # (H, 1) lane reduce
            return acc + jnp.sum(part, axis=0, keepdims=True)    # (1, 1) sublane reduce

        total = lax.fori_loop(0, Nb, one_image, jnp.zeros((1, 1), jnp.float32))
        out_ref[...] = total                                     # one tiny partial per step
    return gmse_kernel


def gaussian_mse(x, target, kernel=None):
    """Pallas equivalent of GaussianMSE.forward(x, target, kernel). Returns a scalar."""
    N, C, H, W = x.shape
    Nt, Ct, Hin, Win = target.shape
    assert (N, C) == (Nt, Ct), "x / target batch-channel mismatch"
    assert kernel is None or C == 1, "conv smoothing expects single-channel heatmaps"
    assert Hin % H == 0 and Win % W == 0, "divisible adaptive-pool case only"
    # TODO(synk): general (non-divisible) adaptive_max_pool2d window arithmetic.
    Rh, Rw = Hin // H, Win // W

    L_np, R_np = _build_lr_matrices(H, W, Hin, Win, Rh, Rw, kernel)
    nr = int(L_np.shape[0])

    # Fold channels into the batch axis (free, contiguity-preserving reshape).
    NC = N * C
    x2 = x.reshape(NC, H, W)
    t2 = target.reshape(NC, Hin, Win)

    def tile_bytes(rows, cols, itemsize):     # (8, 128)-padded footprint
        return ((rows + 7) // 8 * 8) * ((cols + 127) // 128 * 128) * itemsize

    # Batch Nb images per grid step: amortize per-step overhead at small H, W while
    # keeping double-buffered blocks small (v7x has only 64 MiB physical VMEM), and
    # keep the grid length >= 2 so the batch axis can shard across v7x's two TCs.
    per_img = tile_bytes(Hin, Win, target.dtype.itemsize) + tile_bytes(H, W, x.dtype.itemsize)
    nb_cap = max(1, (512 * 1024) // per_img)
    if NC >= 2:
        nb_cap = min(nb_cap, max(1, NC // 2))
    Nb = max(d for d in range(1, NC + 1) if NC % d == 0 and d <= nb_cap)
    G = NC // Nb

    # Tightened scoped-VMEM estimate: double-buffered blocks + resident L/R operands
    # + live f32 temporaries of ONE image (fori_loop bounds their live range).
    est = 2 * Nb * per_img
    est += 2 * nr * (tile_bytes(H, Hin, 4) + tile_bytes(Win, W, 4))
    est += 4 * tile_bytes(Hin, Win, 4) + 2 * tile_bytes(H, Win, 4) + 3 * tile_bytes(H, W, 4)

    cp = dict(dimension_semantics=("parallel",))
    if est > (14 << 20):
        try:
            phys = pltpu.get_tpu_info().vmem_capacity_bytes
        except Exception:
            phys = 64 << 20                    # assume the smallest (v7x) when unknown
        cp["vmem_limit_bytes"] = int(min(est + (4 << 20), (phys * 3) // 4))
        # TODO(synk): tile H (with (ksz//2)-row halos) for heatmaps whose per-image
        # block no longer fits VMEM, instead of only raising the scoped limit.

    kern = _make_gmse_kernel(H, W, Hin, Win, Rh, Rw, Nb, nr)

    partials = pl.pallas_call(
        kern,
        out_shape=jax.ShapeDtypeStruct((G, 1, 1), jnp.float32),
        grid=(G,),
        in_specs=[
            pl.BlockSpec((nr, H, Hin), lambda g: (0, 0, 0)),     # L operators (resident)
            pl.BlockSpec((nr, Win, W), lambda g: (0, 0, 0)),     # R operators (resident)
            pl.BlockSpec((Nb, H, W), lambda g: (g, 0, 0)),       # x: Nb images per step
            pl.BlockSpec((Nb, Hin, Win), lambda g: (g, 0, 0)),   # target: Nb images per step
        ],
        out_specs=pl.BlockSpec((None, 1, 1), lambda g: (g, 0, 0)),
        compiler_params=pltpu.CompilerParams(**cp),
    )(jnp.asarray(L_np), jnp.asarray(R_np), x2, t2)

    return jnp.sum(partials) / float(N * C * H * W)


def gaussian_mse_ref(x, target, kernel):
    """Pure-JAX reference for the divisible adaptive-pool case."""
    N, C, H, W = x.shape
    Rh, Rw = target.shape[2] // H, target.shape[3] // W
    pooled = target.reshape(N, C, H, Rh, W, Rw).max(axis=(3, 5)).astype(jnp.float32)
    if kernel is not None:
        pooled = lax.conv_general_dilated(
            pooled, kernel.astype(jnp.float32), window_strides=(1, 1), padding="SAME",
            dimension_numbers=("NCHW", "OIHW", "NCHW"),
            precision=lax.Precision.HIGHEST)
    return jnp.mean((x.astype(jnp.float32) - pooled) ** 2)


if __name__ == "__main__":
    key = jax.random.PRNGKey(0)
    k1, k2, k3, k4 = jax.random.split(key, 4)

    # Case 1: 5x5 Gaussian smoothing kernel, 2x2 adaptive max-pool windows.
    N, C, H, W, R, K = 2, 1, 16, 16, 2, 5
    x = jax.random.normal(k1, (N, C, H, W), dtype=jnp.float32)
    target = jax.random.uniform(k2, (N, C, H * R, W * R), dtype=jnp.float32)
    ax = jnp.arange(K, dtype=jnp.float32) - (K - 1) / 2.0
    g2 = jnp.exp(-(ax[:, None] ** 2 + ax[None, :] ** 2) / 2.0)
    gauss_kernel = (g2 / jnp.sum(g2)).reshape(1, 1, K, K)

    loss = jax.block_until_ready(gaussian_mse(x, target, gauss_kernel))
    ref = gaussian_mse_ref(x, target, gauss_kernel)
    assert jnp.allclose(loss, ref, rtol=1e-4, atol=1e-5), (float(loss), float(ref))

    # Case 2: kernel=None with 3x3 pooling windows (exercises the Rh=Rw=3 roll paths).
    target3 = jax.random.uniform(k3, (N, C, H * 3, W * 3), dtype=jnp.float32)
    loss2 = jax.block_until_ready(gaussian_mse(x, target3, None))
    ref2 = gaussian_mse_ref(x, target3, None)
    assert jnp.allclose(loss2, ref2, rtol=1e-4, atol=1e-5), (float(loss2), float(ref2))

    # Case 3: multi-channel heatmaps with kernel=None (channel folding + Nb>1 batching).
    x4 = jax.random.normal(k4, (2, 4, 16, 16), dtype=jnp.float32)
    t4 = jax.random.uniform(k2, (2, 4, 32, 32), dtype=jnp.float32)
    loss3 = jax.block_until_ready(gaussian_mse(x4, t4, None))
    ref3 = gaussian_mse_ref(x4, t4, None)
    assert jnp.allclose(loss3, ref3, rtol=1e-4, atol=1e-5), (float(loss3), float(ref3))

    print("KERNEL_OK")
</pallas_src>

<mosaic_0001>
module attributes {stable_mosaic.version = 11 : i64} {
  func.func @gmse_kernel(%arg0: i32, %arg1: memref<1x16x32xf32, #tpu.memory_space<vmem>>, %arg2: memref<1x32x16xf32, #tpu.memory_space<vmem>>, %arg3: memref<1x16x16xf32, #tpu.memory_space<vmem>>, %arg4: memref<1x32x32xf32, #tpu.memory_space<vmem>>, %arg5: memref<1x1x1xf32, #tpu.memory_space<vmem>>) attributes {dimension_semantics = [#tpu.dimension_semantics<parallel>], iteration_bounds = array<i64: 2>, scalar_prefetch = 0 : i64, scratch_operands = 0 : i64, tpu.core_type = #tpu.core_type<tc>, window_params = [{pipeline_mode = #tpu.pipeline_mode<synchronous>, transform_indices = @transform_0, window_bounds = array<i64: 1, 16, 32>}, {pipeline_mode = #tpu.pipeline_mode<synchronous>, transform_indices = @transform_1, window_bounds = array<i64: 1, 32, 16>}, {transform_indices = @transform_2, window_bounds = array<i64: 1, 16, 16>}, {transform_indices = @transform_3, window_bounds = array<i64: 1, 32, 32>}, {transform_indices = @transform_4, window_bounds = array<i64: 1, 1, 1>}]} {
    %cst = arith.constant 0.000000e+00 : f32
    %0 = vector.broadcast %cst : f32 to vector<1x1xf32>
    %c0_i32 = arith.constant 0 : i32
    %1 = arith.index_cast %c0_i32 : i32 to index
    %c0 = arith.constant 0 : index
    %c0_0 = arith.constant 0 : index
    %2 = vector.load %arg4[%1, %c0, %c0_0] : memref<1x32x32xf32, #tpu.memory_space<vmem>>, vector<1x32x32xf32>
    %3 = vector.shape_cast %2 : vector<1x32x32xf32> to vector<32x32xf32>
    %c31_i32 = arith.constant 31 : i32
    %4 = tpu.dynamic_rotate %3 by %c31_i32 dim 0 : vector<32x32xf32>, i32 -> vector<32x32xf32>
    %5 = arith.maximumf %3, %4 : vector<32x32xf32>
    %c31_i32_1 = arith.constant 31 : i32
    %6 = tpu.dynamic_rotate %5 by %c31_i32_1 dim 1 : vector<32x32xf32>, i32 -> vector<32x32xf32>
    %7 = arith.maximumf %5, %6 : vector<32x32xf32>
    %cst_2 = arith.constant 0.000000e+00 : f32
    %8 = vector.broadcast %cst_2 : f32 to vector<16x16xf32>
    %c0_3 = arith.constant 0 : index
    %c0_4 = arith.constant 0 : index
    %c0_5 = arith.constant 0 : index
    %9 = vector.load %arg1[%c0_3, %c0_4, %c0_5] : memref<1x16x32xf32, #tpu.memory_space<vmem>>, vector<1x16x32xf32>
    %10 = vector.shape_cast %9 : vector<1x16x32xf32> to vector<16x32xf32>
    %cst_6 = arith.constant dense<0.000000e+00> : vector<16x32xf32>
    %11 = tpu.matmul %10, %7, %cst_6 {dimension_numbers = #tpu.dot_dimension_numbers<[1], [0], [0], [1], [0, 0, 1, 1], [], []>, precision = #tpu.contract_precision<fp32>} : vector<16x32xf32>, vector<32x32xf32>, vector<16x32xf32> -> vector<16x32xf32>
    %c0_7 = arith.constant 0 : index
    %c0_8 = arith.constant 0 : index
    %c0_9 = arith.constant 0 : index
    %12 = vector.load %arg2[%c0_7, %c0_8, %c0_9] : memref<1x32x16xf32, #tpu.memory_space<vmem>>, vector<1x32x16xf32>
    %13 = vector.shape_cast %12 : vector<1x32x16xf32> to vector<32x16xf32>
    %cst_10 = arith.constant dense<0.000000e+00> : vector<16x16xf32>
    %14 = tpu.matmul %11, %13, %cst_10 {dimension_numbers = #tpu.dot_dimension_numbers<[1], [0], [0], [1], [0, 0, 1, 1], [], []>, precision = #tpu.contract_precision<fp32>} : vector<16x32xf32>, vector<32x16xf32>, vector<16x16xf32> -> vector<16x16xf32>
    %15 = arith.addf %8, %14 : vector<16x16xf32>
    %16 = arith.index_cast %c0_i32 : i32 to index
    %c0_11 = arith.constant 0 : index
    %c0_12 = arith.constant 0 : index
    %17 = vector.load %arg3[%16, %c0_11, %c0_12] : memref<1x16x16xf32, #tpu.memory_space<vmem>>, vector<1x16x16xf32>
    %18 = vector.shape_cast %17 : vector<1x16x16xf32> to vector<16x16xf32>
    %19 = arith.subf %18, %15 : vector<16x16xf32>
    %20 = arith.mulf %19, %19 : vector<16x16xf32>
    %cst_13 = arith.constant dense<0.000000e+00> : vector<16xf32>
    %21 = vector.multi_reduction <add>, %20, %cst_13 [1] : vector<16x16xf32> to vector<16xf32>
    %22 = vector.shape_cast %21 : vector<16xf32> to vector<16x1xf32>
    %cst_14 = arith.constant dense<0.000000e+00> : vector<1xf32>
    %23 = vector.multi_reduction <add>, %22, %cst_14 [0] : vector<16x1xf32> to vector<1xf32>
    %24 = vector.shape_cast %23 : vector<1xf32> to vector<1x1xf32>
    %25 = arith.addf %0, %24 : vector<1x1xf32>
    %c1_i32 = arith.constant 1 : i32
    %c0_15 = arith.constant 0 : index
    %c0_16 = arith.constant 0 : index
    %c0_17 = arith.constant 0 : index
    %26 = vector.load %arg5[%c0_15, %c0_16, %c0_17] : memref<1x1x1xf32, #tpu.memory_space<vmem>>, vector<1x1x1xf32>
    %27 = vector.shape_cast %26 : vector<1x1x1xf32> to vector<1x1xf32>
    %28 = vector.shape_cast %25 : vector<1x1xf32> to vector<1x1x1xf32>
    tpu.vector_store %arg5[%c0_15, %c0_16, %c0_17], %28 {strides = array<i32>} : memref<1x1x1xf32, #tpu.memory_space<vmem>>, vector<1x1x1xf32>,
    return
  }
  func.func @transform_0(%arg0: i32) -> (i32, i32, i32) {
    %c0_i32 = arith.constant 0 : i32
    %c0_i32_0 = arith.constant 0 : i32
    %c0_i32_1 = arith.constant 0 : i32
    %c0_i32_2 = arith.constant 0 : i32
    return %c0_i32, %c0_i32_0, %c0_i32_1 : i32, i32, i32
  }
  func.func @transform_1(%arg0: i32) -> (i32, i32, i32) {
    %c0_i32 = arith.constant 0 : i32
    %c0_i32_0 = arith.constant 0 : i32
    %c0_i32_1 = arith.constant 0 : i32
    %c0_i32_2 = arith.constant 0 : i32
    return %c0_i32, %c0_i32_0, %c0_i32_1 : i32, i32, i32
  }
  func.func @transform_2(%arg0: i32) -> (i32, i32, i32) {
    %c0_i32 = arith.constant 0 : i32
    %c0_i32_0 = arith.constant 0 : i32
    %c0_i32_1 = arith.constant 0 : i32
    return %arg0, %c0_i32, %c0_i32_0 : i32, i32, i32
  }
  func.func @transform_3(%arg0: i32) -> (i32, i32, i32) {
    %c0_i32 = arith.constant 0 : i32
    %c0_i32_0 = arith.constant 0 : i32
    %c0_i32_1 = arith.constant 0 : i32
    return %arg0, %c0_i32, %c0_i32_0 : i32, i32, i32
  }
  func.func @transform_4(%arg0: i32) -> (i32, i32, i32) {
    %c0_i32 = arith.constant 0 : i32
    %c0_i32_0 = arith.constant 0 : i32
    %c0_i32_1 = arith.constant 0 : i32
    return %arg0, %c0_i32, %c0_i32_0 : i32, i32, i32
  }
}

</mosaic_0001>

<llo_original>
// kernel: tpu_custom_call.1
$region0: #{tpu_custom_call.1}
  #allocation0 [shape = 'u32[]', space=smem, size = 0x4, offset = 0x4, fixed_abs, tag = 'smem constant byte address 0x4 - core index']
  #allocation1 [shape = 'u32[144,128]{1,0:T(1,128)}', space=vmem, size = 0x12000, scoped, tag = 'internal scratch']
  %s0 = inlined_call_operand.vmem [shape: f32[1,16,32], index: 0, kind: input, shape index: {}]
  %s1 = inlined_call_operand.vmem [shape: f32[1,32,16], index: 1, kind: input, shape index: {}]
  %s2 = inlined_call_operand.vmem [shape: f32[2,16,16], index: 2, kind: input, shape index: {}]
  %s3 = inlined_call_operand.hbm [shape: f32[2,32,32], index: 3, kind: input, shape index: {}]
  %s4 = inlined_call_operand.vmem [shape: f32[2,1,1], index: 4, kind: output, shape index: {}]
  %s5 = sld [smem:[#allocation0]]
  $region53: #{tpu_custom_call.1} parent=0
    _
  %s7 = ssub.s32 1, %s5
  %s8 = scalar_select 0, %s7, %s5
  $region1: #{tpu_custom_call.1} parent=0
    #allocation2 [shape = 'u8[32768]{0}', space=vmem, size = 0x8000, scoped, tag = 'input window, operand 3']
    #allocation3 [shape = 's32[2]{0}', space=sflag, size = 0x8, scoped, tag = 'scoped memory for tpu_custom_call.1']
    %9 = vsyncpa [#allocation3], 0
    %s10 = scalar_lea.sflag [#allocation3], 1
    %11 = vsyncpa %s10, 0
    loop: start=0, step=1, limit=4
    $region2: #{tpu_custom_call.1} parent=1 // loop_pre_header
      _
    $region3: #{tpu_custom_call.1} parent=1 // loop_header
      %s13 = sphi 0, %s17
      %p14 = scmp.ge.s32.totalorder %s13, 4
      %s21 = sphi 0, %s21
      %s23 = sphi 0, %s21
      %s24 = sphi 0, %s23
      %s38 = sphi 0, %s24
      %s42 = sphi 0, %s42
      %s44 = sphi 0, %s42
      %s45 = sphi 0, %s44
      %s59 = sphi 0, %s45
      %s65 = sphi 0, %s67
      %s68 = sphi 0, %s65
      %s69 = sphi 0, %s68
      %s85 = sphi 0, %s69
      %s91 = sphi 0, %s93
      %s94 = sphi 0, %s91
      %s95 = sphi 0, %s94
      %s111 = sphi 0, %s95
      %s117 = sphi 0, %s119
      %s120 = sphi 0, %s117
      %s121 = sphi 0, %s120
      %s137 = sphi 0, %s121
    $region4: #{tpu_custom_call.1} parent=1 // loop_header_branch
      %16 = sbr.rel (%p14) target = $region8
    $region5: #{tpu_custom_call.1} parent=1 // loop_body
      %s18 = ssub.s32 %s13, 1
      %s19 = ssub.s32 %s13, 2
      %s20 = sadd.s32 %s13, 1
      %s22 = sadd.s32 %s21, 1
      %p25 = scmp.eq.s32.totalorder %s13, 1
      %p26 = scmp.ne.s32.totalorder %s21, %s23
      %p27 = scmp.eq.s32.totalorder %s13, 0
      %p28 = por %p26, %p27
      %p29 = scmp.ne.s32.totalorder %s21, %s23
      %p30 = scmp.eq.s32.totalorder %s18, 1
      %p31 = por %p29, %p30
      %p32 = scmp.ne.s32.totalorder %s23, %s24
      %p33 = scmp.eq.s32.totalorder %s18, 0
      %p34 = por %p32, %p33
      %p35 = scmp.ne.s32.totalorder %s23, %s24
      %p36 = scmp.eq.s32.totalorder %s19, 1
      %p37 = por %p35, %p36
      %p39 = scmp.ne.s32.totalorder %s24, %s38
      %p40 = scmp.eq.s32.totalorder %s19, 0
      %p41 = por %p39, %p40
      %s43 = sadd.s32 %s42, 1
      %p46 = scmp.eq.s32.totalorder %s13, 1
      %p47 = scmp.ne.s32.totalorder %s42, %s44
      %p48 = scmp.eq.s32.totalorder %s13, 0
      %p49 = por %p47, %p48
      %p50 = scmp.ne.s32.totalorder %s42, %s44
      %p51 = scmp.eq.s32.totalorder %s18, 1
      %p52 = por %p50, %p51
      %p53 = scmp.ne.s32.totalorder %s44, %s45
      %p54 = scmp.eq.s32.totalorder %s18, 0
      %p55 = por %p53, %p54
      %p56 = scmp.ne.s32.totalorder %s44, %s45
      %p57 = scmp.eq.s32.totalorder %s19, 1
      %p58 = por %p56, %p57
      %p60 = scmp.ne.s32.totalorder %s45, %s59
      %p61 = scmp.eq.s32.totalorder %s19, 0
      %p62 = por %p60, %p61
      %s63 = ssub.s32 %s13, %s20
      %p64 = scmp.eq.s32.totalorder %s63, 0
      %s66 = sadd.s32 %s65, 1
      %s67 = scalar_select %p64, %s65, %s66
      %p70 = pneg %p64
      %p71 = scmp.eq.s32.totalorder %s13, 1
      %p72 = por %p70, %p71
      %p73 = scmp.ne.s32.totalorder %s65, %s68
      %p74 = scmp.eq.s32.totalorder %s13, 0
      %p75 = por %p73, %p74
      %p76 = scmp.ne.s32.totalorder %s65, %s68
      %p77 = scmp.eq.s32.totalorder %s18, 1
      %p78 = por %p76, %p77
      %p79 = scmp.ne.s32.totalorder %s68, %s69
      %p80 = scmp.eq.s32.totalorder %s18, 0
      %p81 = por %p79, %p80
      %p82 = scmp.ne.s32.totalorder %s68, %s69
      %p83 = scmp.eq.s32.totalorder %s19, 1
      %p84 = por %p82, %p83
      %p86 = scmp.ne.s32.totalorder %s69, %s85
      %p87 = scmp.eq.s32.totalorder %s19, 0
      %p88 = por %p86, %p87
      %s89 = ssub.s32 %s13, %s20
      %p90 = scmp.eq.s32.totalorder %s89, 0
      %s92 = sadd.s32 %s91, 1
      %s93 = scalar_select %p90, %s91, %s92
      %p96 = pneg %p90
      %p97 = scmp.eq.s32.totalorder %s13, 1
      %p98 = por %p96, %p97
      %p99 = scmp.ne.s32.totalorder %s91, %s94
      %p100 = scmp.eq.s32.totalorder %s13, 0
      %p101 = por %p99, %p100
      %p102 = scmp.ne.s32.totalorder %s91, %s94
      %p103 = scmp.eq.s32.totalorder %s18, 1
      %p104 = por %p102, %p103
      %p105 = scmp.ne.s32.totalorder %s94, %s95
      %p106 = scmp.eq.s32.totalorder %s18, 0
      %p107 = por %p105, %p106
      %p108 = scmp.ne.s32.totalorder %s94, %s95
      %p109 = scmp.eq.s32.totalorder %s19, 1
      %p110 = por %p108, %p109
      %p112 = scmp.ne.s32.totalorder %s95, %s111
      %p113 = scmp.eq.s32.totalorder %s19, 0
      %p114 = por %p112, %p113
      %s115 = ssub.s32 %s13, %s20
      %p116 = scmp.eq.s32.totalorder %s115, 0
      %s118 = sadd.s32 %s117, 1
      %s119 = scalar_select %p116, %s117, %s118
      %p122 = pneg %p116
      %p123 = scmp.eq.s32.totalorder %s13, 1
      %p124 = por %p122, %p123
      %p125 = scmp.ne.s32.totalorder %s117, %s120
      %p126 = scmp.eq.s32.totalorder %s13, 0
      %p127 = por %p125, %p126
      %p128 = scmp.ne.s32.totalorder %s117, %s120
      %p129 = scmp.eq.s32.totalorder %s18, 1
      %p130 = por %p128, %p129
      %p131 = scmp.ne.s32.totalorder %s120, %s121
      %p132 = scmp.eq.s32.totalorder %s18, 0
      %p133 = por %p131, %p132
      %p134 = scmp.ne.s32.totalorder %s120, %s121
      %p135 = scmp.eq.s32.totalorder %s19, 1
      %p136 = por %p134, %p135
      %p138 = scmp.ne.s32.totalorder %s121, %s137
      %p139 = scmp.eq.s32.totalorder %s19, 0
      %p140 = por %p138, %p139
      %p141 = scmp.le.s32.totalorder 1, %s13
      %p142 = scmp.lt.s32.totalorder %s13, 3
      %p143 = pnand %p141, %p142
      %p144 = pneg %p143
      // Predicated region
      $region9: #{tpu_custom_call.1} parent=5 // pred_check
        _
      $region10: #{tpu_custom_call.1} parent=5 // pred_check_branch
        %146 = sbr.rel (%p143) target = $region12
      $region11: #{tpu_custom_call.1} parent=5 // pred_region
        %s147 = ssub.s32 %s13, 1
        // Predicated region
        $region13: #{tpu_custom_call.1} parent=11 // pred_check
          %p148 = pneg %p34
        $region14: #{tpu_custom_call.1} parent=11 // pred_check_branch
          %150 = sbr.rel (%p148) target = $region16
        $region15: #{tpu_custom_call.1} parent=11 // pred_region
          _
        $region16: #{tpu_custom_call.1} parent=11 // pred_fallthru
          _
        // Predicated region
        $region17: #{tpu_custom_call.1} parent=11 // pred_check
          %p151 = pneg %p55
        $region18: #{tpu_custom_call.1} parent=11 // pred_check_branch
          %153 = sbr.rel (%p151) target = $region20
        $region19: #{tpu_custom_call.1} parent=11 // pred_region
          _
        $region20: #{tpu_custom_call.1} parent=11 // pred_fallthru
          _
      $region12: #{tpu_custom_call.1} parent=5 // pred_fallthru
        _
      %p154 = scmp.lt.s32.totalorder %s13, 2
      // Predicated region
      $region21: #{tpu_custom_call.1} parent=5 // pred_check
        %p155 = pneg %p154
      $region22: #{tpu_custom_call.1} parent=5 // pred_check_branch
        %157 = sbr.rel (%p155) target = $region24
      $region23: #{tpu_custom_call.1} parent=5 // pred_region
        // Predicated region
        $region25: #{tpu_custom_call.1} parent=23 // pred_check
          %p158 = pneg %p75
        $region26: #{tpu_custom_call.1} parent=23 // pred_check_branch
          %160 = sbr.rel (%p158) target = $region28
        $region27: #{tpu_custom_call.1} parent=23 // pred_region
          %p161 = scmp.lt.s32.totalorder %s13, 1
          %s162 = scalar_select %p161, %s13, 1
          %s163 = smul.addr %s162, 2
          %s164 = smul.addr %s163, 8
          %s165 = scalar_lea.vmem %s2, %s164
        $region28: #{tpu_custom_call.1} parent=23 // pred_fallthru
          _
        // Predicated region
        $region29: #{tpu_custom_call.1} parent=23 // pred_check
          %p166 = pneg %p101
        $region30: #{tpu_custom_call.1} parent=23 // pred_check_branch
          %168 = sbr.rel (%p166) target = $region32
        $region31: #{tpu_custom_call.1} parent=23 // pred_region
          %s169 = sand.u32 %s91, 1
          %s170 = scalar_lea.sflag [#allocation3], %s169
          %s171 = sand.u32 %s91, 1
          %s172 = smul.addr %s171, 32
          %s173 = scalar_lea.vmem [#allocation2], %s172
          %s175 = ssub.s32 512, 512
          %176 = vsyncadd %s170, %s175
          %s177 = smul.addr %s13, 4
          %s178 = smul.addr %s177, 128
          %s179 = scalar_lea.hbm %s3, %s178
          %s180 = sshll.u32 %s173, 4
          %s181 = int_to_ptr.vmem [resolvable:$true] %s180
          %186 = dma.hbm_to_vmem [thread:$0]  %s179, 512, %s181, %s170, 128, 128, 8
        $region32: #{tpu_custom_call.1} parent=23 // pred_fallthru
          _
      $region24: #{tpu_custom_call.1} parent=5 // pred_fallthru
        _
      %p187 = scmp.le.s32.totalorder 1, %s13
      %p188 = scmp.lt.s32.totalorder %s13, 3
      %p189 = pnand %p187, %p188
      %p190 = pneg %p189
      // Predicated region
      $region33: #{tpu_custom_call.1} parent=5 // pred_check
        _
      $region34: #{tpu_custom_call.1} parent=5 // pred_check_branch
        %192 = sbr.rel (%p189) target = $region36
      $region35: #{tpu_custom_call.1} parent=5 // pred_region
        %s193 = ssub.s32 %s13, 1
        %s194 = sand.u32 %s94, 1
        %s195 = scalar_lea.sflag [#allocation3], %s194
        %s196 = sand.u32 %s94, 1
        %s197 = smul.addr %s196, 32
        %s198 = scalar_lea.vmem [#allocation2], %s197
        // Predicated region
        $region37: #{tpu_custom_call.1} parent=35 // pred_check
          %p199 = pneg %p107
        $region38: #{tpu_custom_call.1} parent=35 // pred_check_branch
          %201 = sbr.rel (%p199) target = $region40
        $region39: #{tpu_custom_call.1} parent=35 // pred_region
          %202 = dma.done %s195, 512
        $region40: #{tpu_custom_call.1} parent=35 // pred_fallthru
          _
        %p203 = pneg %p34
        %p204 = pneg %p31
        %p205 = pneg %p55
        %p206 = pneg %p52
        %p207 = scmp.lt.s32.totalorder %s18, 1
        %s208 = scalar_select %p207, %s18, 1
        %s209 = smul.addr %s208, 2
        %s210 = smul.addr %s209, 8
        %s211 = scalar_lea.vmem %s2, %s210
        %p212 = pneg %p81
        %p213 = pneg %p78
        %s214 = sand.u32 %s94, 1
        %s215 = scalar_lea.sflag [#allocation3], %s214
        %s216 = sand.u32 %s94, 1
        %s217 = smul.addr %s216, 32
        %s218 = scalar_lea.vmem [#allocation2], %s217
        %p219 = pneg %p107
        %p220 = pneg %p104
        %p221 = pneg %p133
        %p222 = pneg %p130
        %p223 = scmp.lt.s32.totalorder %s18, 1
        %s224 = scalar_select %p223, %s18, 1
        %s225 = scalar_lea.vmem %s4, %s224
        %p226 = scmp.lt.s32.totalorder %s18, 1
        %s227 = scalar_select %p226, %s18, 1
        %s228 = smul.addr %s227, 2
        %s229 = smul.addr %s228, 8
        %s230 = scalar_lea.vmem %s2, %s229
        %p231 = scmp.lt.s32.totalorder %s18, 1
        %s232 = scalar_select %p231, %s18, 1
        %s233 = scalar_lea.vmem %s4, %s232
        %v234 = vld [vmem:[%s198] sm:$0xff]
        %v235 = vld [vmem:[%s198 + $0x8] sm:$0xff]
        %v236 = vld [vmem:[%s198 + $0x10] sm:$0xff]
        %v237 = vld [vmem:[%s198 + $0x18] sm:$0xff]
        %v238 = vrot.slane %v234, 1
        %v239 = vrot.slane %v235, 1
        %v240 = vrot.slane %v236, 1
        %v241 = vrot.slane %v237, 1
        %v242 = vlaneseq
        %v243 = vshrl.u32 %v242, 7
        %vm244 = vcmp.lt.s32.totalorder %v243, 7
        %v245 = vsel %vm244, %v240, %v241
        %v246 = vsel %vm244, %v239, %v240
        %v247 = vsel %vm244, %v238, %v239
        %v248 = vsel %vm244, %v241, %v238
        %v249 = vmax.f32 %v234, %v247
        %v250 = vmax.f32 %v235, %v246
        %v251 = vmax.f32 %v236, %v245
        %v252 = vmax.f32 %v237, %v248
        %vm253 = vcmask 1047808
        %254 = vrot.lane.b32.xlu0 %v249, 32
        %v255 = vpop.permute.xlu0 %254
        %v256 = vsel %vm253, %v255, %v249
        %257 = vrot.lane.b32.xlu0 %v250, 32
        %v258 = vpop.permute.xlu0 %257
        %v259 = vsel %vm253, %v258, %v250
        %260 = vrot.lane.b32.xlu0 %v251, 32
        %v261 = vpop.permute.xlu0 %260
        %v262 = vsel %vm253, %v261, %v251
        %263 = vrot.lane.b32.xlu0 %v252, 32
        %v264 = vpop.permute.xlu0 %263
        %v265 = vsel %vm253, %v264, %v252
        %266 = vrot.lane.b32.xlu0 %v256, 32
        %v267 = vpop.permute.xlu0 %266
        %268 = vrot.lane.b32.xlu0 %v259, 32
        %v269 = vpop.permute.xlu0 %268
        %270 = vrot.lane.b32.xlu0 %v262, 32
        %v271 = vpop.permute.xlu0 %270
        %272 = vrot.lane.b32.xlu0 %v265, 32
        %v273 = vpop.permute.xlu0 %272
        %v274 = vsel %vm253, %v267, %v249
        %v275 = vsel %vm253, %v269, %v250
        %v276 = vsel %vm253, %v271, %v251
        %v277 = vsel %vm253, %v273, %v252
        %282 = vrot.lane.b32.xlu0 %v274, 127
        %v283 = vpop.permute.xlu0 %282
        %284 = vrot.lane.b32.xlu0 %v275, 127
        %v285 = vpop.permute.xlu0 %284
        %286 = vrot.lane.b32.xlu0 %v276, 127
        %v287 = vpop.permute.xlu0 %286
        %288 = vrot.lane.b32.xlu0 %v277, 127
        %v289 = vpop.permute.xlu0 %288
        %v294 = vmax.f32 %v249, %v283
        %v295 = vmax.f32 %v250, %v285
        %v296 = vmax.f32 %v251, %v287
        %v297 = vmax.f32 %v252, %v289
        %v298 = vld [vmem:[%s0] sm:$0xff]
        %v299 = vld [vmem:[%s0 + $0x8] sm:$0xff]
        %vm300 = vcmask 261120
        %v302 = vsel %vm300, %v298, 0
        %v305 = vsel %vm300, %v299, 0
        %307 = vmatprep.subr.mxu0 0.0
        %v308 = vand.u32 %v294, 4294901760
        %309 = vmatpush1.msra.mxu0 %v308
        %310 = vmatprep.subr.mxu0 0.0
        %v311 = vand.u32 %v295, 4294901760
        %312 = vmatpush1.msra.mxu0 %v311
        %313 = vmatprep.subr.mxu0 0.0
        %v314 = vand.u32 %v296, 4294901760
        %315 = vmatpush1.msra.mxu0 %v314
        %316 = vmatprep.subr.mxu0 0.0
        %v317 = vand.u32 %v297, 4294901760
        %318 = vmatpush1.msra.mxu0 %v317
        %319 = vmatprep.subr.mxu0 0.0
        %320 = vmatpush1.msra.mxu0 0.0
        %321 = vmatprep.subr.mxu0 0.0
        %322 = vmatpush1.msra.mxu0 0.0
        %323 = vmatprep.subr.mxu0 0.0
        %324 = vmatpush1.msra.mxu0 0.0
        %325 = vmatprep.subr.mxu0 0.0
        %326 = vmatpush1.msra.mxu0 0.0
        %327 = vmatprep.subr.mxu0 0.0
        %328 = vmatpush1.msra.mxu0 0.0
        %329 = vmatprep.subr.mxu0 0.0
        %330 = vmatpush1.msra.mxu0 0.0
        %331 = vmatprep.subr.mxu0 0.0
        %332 = vmatpush1.msra.mxu0 0.0
        %333 = vmatprep.subr.mxu0 0.0
        %334 = vmatpush1.msra.mxu0 0.0
        %335 = vmatprep.subr.mxu0 0.0
        %336 = vmatpush1.msra.mxu0 0.0
        %337 = vmatprep.subr.mxu0 0.0
        %338 = vmatpush1.msra.mxu0 0.0
        %339 = vmatprep.subr.mxu0 0.0
        %340 = vmatpush1.msra.mxu0 0.0
        %341 = vmatprep.subr.mxu0 0.0
        %342 = vmatpush1.msra.mxu0 0.0
        %343 = vmatprep.subr.mxu0 0.0
        %344 = vmatpush1.msra.mxu0 0.0
        %345 = vmatprep.subr.mxu0 0.0
        %346 = vmatpush1.msra.mxu0 0.0
        %347 = vmatprep.subr.mxu0 0.0
        %348 = vmatpush1.msra.mxu0 0.0
        %349 = vmatprep.subr.mxu0 0.0
        %350 = vmatpush1.msra.mxu0 0.0
        %351 = vmatprep.subr.mxu0 0.0
        %352 = vmatpush1.msra.mxu0 0.0
        %353 = vmatprep.subr.mxu0 0.0
        %354 = vmatpush1.msra.mxu0 0.0
        %355 = vmatprep.subr.mxu0 0.0
        %356 = vmatpush1.msra.mxu0 0.0
        %357 = vmatprep.subr.mxu0 0.0
        %358 = vmatpush1.msra.mxu0 0.0
        %359 = vmatprep.subr.mxu0 0.0
        %360 = vmatpush1.msra.mxu0 0.0
        %361 = vmatprep.subr.mxu0 0.0
        %362 = vmatpush1.msra.mxu0 0.0
        %363 = vmatprep.subr.mxu0 0.0
        %364 = vmatpush1.msra.mxu0 0.0
        %365 = vmatprep.subr.mxu0 0.0
        %366 = vmatpush1.msra.mxu0 0.0
        %367 = vmatprep.subr.mxu0 0.0
        %368 = vmatpush1.msra.mxu0 0.0
        %369 = vmatprep.subr.mxu0 0.0
        %370 = vmatpush1.msra.mxu0 0.0
        %371 = vmatprep.subr.mxu0 0.0
        %372 = vmatpush1.msra.mxu0 0.0
        %373 = vmatprep.subr.mxu0 0.0
        %374 = vmatpush1.msra.mxu0 0.0
        %375 = vmatprep.mubr.f32.mxu0 0.0
        %v376 = vand.u32 %v302, 4294901760
        %v377 = vsub.f32 %v302, %v376
        %v378 = vand.u32 %v377, 4294901760
        %v379 = vsub.f32 %v377, %v378
        %v380 = vand.u32 %v379, 4294901760
        %381 = vmatmul.mubr.f32.gmra.mrb[0].mxu0 %v380
        %v382 = vpop.f32.mrb[0].mxu0
        %v383 = vadd.f32 0.0, %v382
        %v384 = vpop.f32.mrb[0].mxu0
        %385 = vmatprep.mubr.f32.mxu0 0.0
        %v386 = vand.u32 %v305, 4294901760
        %v387 = vsub.f32 %v305, %v386
        %v388 = vand.u32 %v387, 4294901760
        %v389 = vsub.f32 %v387, %v388
        %v390 = vand.u32 %v389, 4294901760
        %391 = vmatmul.mubr.f32.gmra.mrb[0].mxu0 %v390
        %v392 = vpop.f32.mrb[0].mxu0
        %v393 = vadd.f32 0.0, %v392
        %v394 = vpop.f32.mrb[0].mxu0
        %395 = vdwg.mxu0
        %396 = vmatprep.subr.mxu0 0.0
        %v397 = vand.u32 %v294, 4294901760
        %v398 = vsub.f32 %v294, %v397
        %v399 = vand.u32 %v398, 4294901760
        %v400 = vsub.f32 %v398, %v399
        %v401 = vand.u32 %v400, 4294901760
        %402 = vmatpush1.msra.mxu0 %v401
        %403 = vmatprep.subr.mxu0 0.0
        %v404 = vand.u32 %v295, 4294901760
        %v405 = vsub.f32 %v295, %v404
        %v406 = vand.u32 %v405, 4294901760
        %v407 = vsub.f32 %v405, %v406
        %v408 = vand.u32 %v407, 4294901760
        %409 = vmatpush1.msra.mxu0 %v408
        %410 = vmatprep.subr.mxu0 0.0
        %v411 = vand.u32 %v296, 4294901760
        %v412 = vsub.f32 %v296, %v411
        %v413 = vand.u32 %v412, 4294901760
        %v414 = vsub.f32 %v412, %v413
        %v415 = vand.u32 %v414, 4294901760
        %416 = vmatpush1.msra.mxu0 %v415
        %417 = vmatprep.subr.mxu0 0.0
        %v418 = vand.u32 %v297, 4294901760
        %v419 = vsub.f32 %v297, %v418
        %v420 = vand.u32 %v419, 4294901760
        %v421 = vsub.f32 %v419, %v420
        %v422 = vand.u32 %v421, 4294901760
        %423 = vmatpush1.msra.mxu0 %v422
        %424 = vmatprep.subr.mxu0 0.0
        %425 = vmatpush1.msra.mxu0 0.0
        %426 = vmatprep.subr.mxu0 0.0
        %427 = vmatpush1.msra.mxu0 0.0
        %428 = vmatprep.subr.mxu0 0.0
        %429 = vmatpush1.msra.mxu0 0.0
        %430 = vmatprep.subr.mxu0 0.0
        %431 = vmatpush1.msra.mxu0 0.0
        %432 = vmatprep.subr.mxu0 0.0
        %433 = vmatpush1.msra.mxu0 0.0
        %434 = vmatprep.subr.mxu0 0.0
        %435 = vmatpush1.msra.mxu0 0.0
        %436 = vmatprep.subr.mxu0 0.0
        %437 = vmatpush1.msra.mxu0 0.0
        %438 = vmatprep.subr.mxu0 0.0
        %439 = vmatpush1.msra.mxu0 0.0
        %440 = vmatprep.subr.mxu0 0.0
        %441 = vmatpush1.msra.mxu0 0.0
        %442 = vmatprep.subr.mxu0 0.0
        %443 = vmatpush1.msra.mxu0 0.0
        %444 = vmatprep.subr.mxu0 0.0
        %445 = vmatpush1.msra.mxu0 0.0
        %446 = vmatprep.subr.mxu0 0.0
        %447 = vmatpush1.msra.mxu0 0.0
        %448 = vmatprep.subr.mxu0 0.0
        %449 = vmatpush1.msra.mxu0 0.0
        %450 = vmatprep.subr.mxu0 0.0
        %451 = vmatpush1.msra.mxu0 0.0
        %452 = vmatprep.subr.mxu0 0.0
        %453 = vmatpush1.msra.mxu0 0.0
        %454 = vmatprep.subr.mxu0 0.0
        %455 = vmatpush1.msra.mxu0 0.0
        %456 = vmatprep.subr.mxu0 0.0
        %457 = vmatpush1.msra.mxu0 0.0
        %458 = vmatprep.subr.mxu0 0.0
        %459 = vmatpush1.msra.mxu0 0.0
        %460 = vmatprep.subr.mxu0 0.0
        %461 = vmatpush1.msra.mxu0 0.0
        %462 = vmatprep.subr.mxu0 0.0
        %463 = vmatpush1.msra.mxu0 0.0
        %464 = vmatprep.subr.mxu0 0.0
        %465 = vmatpush1.msra.mxu0 0.0
        %466 = vmatprep.subr.mxu0 0.0
        %467 = vmatpush1.msra.mxu0 0.0
        %468 = vmatprep.subr.mxu0 0.0
        %469 = vmatpush1.msra.mxu0 0.0
        %470 = vmatprep.subr.mxu0 0.0
        %471 = vmatpush1.msra.mxu0 0.0
        %472 = vmatprep.subr.mxu0 0.0
        %473 = vmatpush1.msra.mxu0 0.0
        %474 = vmatprep.subr.mxu0 0.0
        %475 = vmatpush1.msra.mxu0 0.0
        %476 = vmatprep.subr.mxu0 0.0
        %477 = vmatpush1.msra.mxu0 0.0
        %478 = vmatprep.subr.mxu0 0.0
        %479 = vmatpush1.msra.mxu0 0.0
        %480 = vmatprep.mubr.f32.mxu0 0.0
        %v481 = vand.u32 %v302, 4294901760
        %482 = vmatmul.mubr.f32.gmra.mrb[0].mxu0 %v481
        %v483 = vpop.f32.mrb[0].mxu0
        %v484 = vadd.f32 %v383, %v483
        %v485 = vpop.f32.mrb[0].mxu0
        %486 = vmatprep.mubr.f32.mxu0 0.0
        %v487 = vand.u32 %v305, 4294901760
        %488 = vmatmul.mubr.f32.gmra.mrb[0].mxu0 %v487
        %v489 = vpop.f32.mrb[0].mxu0
        %v490 = vadd.f32 %v393, %v489
        %v491 = vpop.f32.mrb[0].mxu0
        %492 = vdwg.mxu0
        %493 = vmatprep.subr.mxu0 0.0
        %v494 = vand.u32 %v294, 4294901760
        %v495 = vsub.f32 %v294, %v494
        %496 = vmatpush1.msra.mxu0 %v495
        %497 = vmatprep.subr.mxu0 0.0
        %v498 = vand.u32 %v295, 4294901760
        %v499 = vsub.f32 %v295, %v498
        %500 = vmatpush1.msra.mxu0 %v499
        %501 = vmatprep.subr.mxu0 0.0
        %v502 = vand.u32 %v296, 4294901760
        %v503 = vsub.f32 %v296, %v502
        %504 = vmatpush1.msra.mxu0 %v503
        %505 = vmatprep.subr.mxu0 0.0
        %v506 = vand.u32 %v297, 4294901760
        %v507 = vsub.f32 %v297, %v506
        %508 = vmatpush1.msra.mxu0 %v507
        %509 = vmatprep.subr.mxu0 0.0
        %510 = vmatpush1.msra.mxu0 0.0
        %511 = vmatprep.subr.mxu0 0.0
        %512 = vmatpush1.msra.mxu0 0.0
        %513 = vmatprep.subr.mxu0 0.0
        %514 = vmatpush1.msra.mxu0 0.0
        %515 = vmatprep.subr.mxu0 0.0
        %516 = vmatpush1.msra.mxu0 0.0
        %517 = vmatprep.subr.mxu0 0.0
        %518 = vmatpush1.msra.mxu0 0.0
        %519 = vmatprep.subr.mxu0 0.0
        %520 = vmatpush1.msra.mxu0 0.0
        %521 = vmatprep.subr.mxu0 0.0
        %522 = vmatpush1.msra.mxu0 0.0
        %523 = vmatprep.subr.mxu0 0.0
        %524 = vmatpush1.msra.mxu0 0.0
        %525 = vmatprep.subr.mxu0 0.0
        %526 = vmatpush1.msra.mxu0 0.0
        %527 = vmatprep.subr.mxu0 0.0
        %528 = vmatpush1.msra.mxu0 0.0
        %529 = vmatprep.subr.mxu0 0.0
        %530 = vmatpush1.msra.mxu0 0.0
        %531 = vmatprep.subr.mxu0 0.0
        %532 = vmatpush1.msra.mxu0 0.0
        %533 = vmatprep.subr.mxu0 0.0
        %534 = vmatpush1.msra.mxu0 0.0
        %535 = vmatprep.subr.mxu0 0.0
        %536 = vmatpush1.msra.mxu0 0.0
        %537 = vmatprep.subr.mxu0 0.0
        %538 = vmatpush1.msra.mxu0 0.0
        %539 = vmatprep.subr.mxu0 0.0
        %540 = vmatpush1.msra.mxu0 0.0
        %541 = vmatprep.subr.mxu0 0.0
        %542 = vmatpush1.msra.mxu0 0.0
        %543 = vmatprep.subr.mxu0 0.0
        %544 = vmatpush1.msra.mxu0 0.0
        %545 = vmatprep.subr.mxu0 0.0
        %546 = vmatpush1.msra.mxu0 0.0
        %547 = vmatprep.subr.mxu0 0.0
        %548 = vmatpush1.msra.mxu0 0.0
        %549 = vmatprep.subr.mxu0 0.0
        %550 = vmatpush1.msra.mxu0 0.0
        %551 = vmatprep.subr.mxu0 0.0
        %552 = vmatpush1.msra.mxu0 0.0
        %553 = vmatprep.subr.mxu0 0.0
        %554 = vmatpush1.msra.mxu0 0.0
        %555 = vmatprep.subr.mxu0 0.0
        %556 = vmatpush1.msra.mxu0 0.0
        %557 = vmatprep.subr.mxu0 0.0
        %558 = vmatpush1.msra.mxu0 0.0
        %559 = vmatprep.subr.mxu0 0.0
        %560 = vmatpush1.msra.mxu0 0.0
        %561 = vmatprep.subr.mxu0 0.0
        %562 = vmatpush1.msra.mxu0 0.0
        %563 = vmatprep.subr.mxu0 0.0
        %564 = vmatpush1.msra.mxu0 0.0
        %565 = vmatprep.mubr.f32.mxu0 0.0
        %v566 = vand.u32 %v302, 4294901760
        %v567 = vsub.f32 %v302, %v566
        %568 = vmatmul.mubr.f32.gmra.mrb[0].mxu0 %v567
        %v569 = vpop.f32.mrb[0].mxu0
        %v570 = vadd.f32 %v484, %v569
        %v571 = vpop.f32.mrb[0].mxu0
        %572 = vmatprep.mubr.f32.mxu0 0.0
        %v573 = vand.u32 %v305, 4294901760
        %v574 = vsub.f32 %v305, %v573
        %575 = vmatmul.mubr.f32.gmra.mrb[0].mxu0 %v574
        %v576 = vpop.f32.mrb[0].mxu0
        %v577 = vadd.f32 %v490, %v576
        %v578 = vpop.f32.mrb[0].mxu0
        %579 = vdwg.mxu0
        %580 = vmatprep.subr.mxu0 0.0
        %v581 = vand.u32 %v294, 4294901760
        %582 = vmatpush1.msra.mxu0 %v581
        %583 = vmatprep.subr.mxu0 0.0
        %v584 = vand.u32 %v295, 4294901760
        %585 = vmatpush1.msra.mxu0 %v584
        %586 = vmatprep.subr.mxu0 0.0
        %v587 = vand.u32 %v296, 4294901760
        %588 = vmatpush1.msra.mxu0 %v587
        %589 = vmatprep.subr.mxu0 0.0
        %v590 = vand.u32 %v297, 4294901760
        %591 = vmatpush1.msra.mxu0 %v590
        %592 = vmatprep.subr.mxu0 0.0
        %593 = vmatpush1.msra.mxu0 0.0
        %594 = vmatprep.subr.mxu0 0.0
        %595 = vmatpush1.msra.mxu0 0.0
        %596 = vmatprep.subr.mxu0 0.0
        %597 = vmatpush1.msra.mxu0 0.0
        %598 = vmatprep.subr.mxu0 0.0
        %599 = vmatpush1.msra.mxu0 0.0
        %600 = vmatprep.subr.mxu0 0.0
        %601 = vmatpush1.msra.mxu0 0.0
        %602 = vmatprep.subr.mxu0 0.0
        %603 = vmatpush1.msra.mxu0 0.0
        %604 = vmatprep.subr.mxu0 0.0
        %605 = vmatpush1.msra.mxu0 0.0
        %606 = vmatprep.subr.mxu0 0.0
        %607 = vmatpush1.msra.mxu0 0.0
        %608 = vmatprep.subr.mxu0 0.0
        %609 = vmatpush1.msra.mxu0 0.0
        %610 = vmatprep.subr.mxu0 0.0
        %611 = vmatpush1.msra.mxu0 0.0
        %612 = vmatprep.subr.mxu0 0.0
        %613 = vmatpush1.msra.mxu0 0.0
        %614 = vmatprep.subr.mxu0 0.0
        %615 = vmatpush1.msra.mxu0 0.0
        %616 = vmatprep.subr.mxu0 0.0
        %617 = vmatpush1.msra.mxu0 0.0
        %618 = vmatprep.subr.mxu0 0.0
        %619 = vmatpush1.msra.mxu0 0.0
        %620 = vmatprep.subr.mxu0 0.0
        %621 = vmatpush1.msra.mxu0 0.0
        %622 = vmatprep.subr.mxu0 0.0
        %623 = vmatpush1.msra.mxu0 0.0
        %624 = vmatprep.subr.mxu0 0.0
        %625 = vmatpush1.msra.mxu0 0.0
        %626 = vmatprep.subr.mxu0 0.0
        %627 = vmatpush1.msra.mxu0 0.0
        %628 = vmatprep.subr.mxu0 0.0
        %629 = vmatpush1.msra.mxu0 0.0
        %630 = vmatprep.subr.mxu0 0.0
        %631 = vmatpush1.msra.mxu0 0.0
        %632 = vmatprep.subr.mxu0 0.0
        %633 = vmatpush1.msra.mxu0 0.0
        %634 = vmatprep.subr.mxu0 0.0
        %635 = vmatpush1.msra.mxu0 0.0
        %636 = vmatprep.subr.mxu0 0.0
        %637 = vmatpush1.msra.mxu0 0.0
        %638 = vmatprep.subr.mxu0 0.0
        %639 = vmatpush1.msra.mxu0 0.0
        %640 = vmatprep.subr.mxu0 0.0
        %641 = vmatpush1.msra.mxu0 0.0
        %642 = vmatprep.subr.mxu0 0.0
        %643 = vmatpush1.msra.mxu0 0.0
        %644 = vmatprep.subr.mxu0 0.0
        %645 = vmatpush1.msra.mxu0 0.0
        %646 = vmatprep.subr.mxu0 0.0
        %647 = vmatpush1.msra.mxu0 0.0
        %648 = vmatprep.mubr.f32.mxu0 0.0
        %v649 = vand.u32 %v302, 4294901760
        %v650 = vsub.f32 %v302, %v649
        %v651 = vand.u32 %v650, 4294901760
        %652 = vmatmul.mubr.f32.gmra.mrb[0].mxu0 %v651
        %v653 = vpop.f32.mrb[0].mxu0
        %v654 = vadd.f32 %v570, %v653
        %v655 = vpop.f32.mrb[0].mxu0
        %656 = vmatprep.mubr.f32.mxu0 0.0
        %v657 = vand.u32 %v305, 4294901760
        %v658 = vsub.f32 %v305, %v657
        %v659 = vand.u32 %v658, 4294901760
        %660 = vmatmul.mubr.f32.gmra.mrb[0].mxu0 %v659
        %v661 = vpop.f32.mrb[0].mxu0
        %v662 = vadd.f32 %v577, %v661
        %v663 = vpop.f32.mrb[0].mxu0
        %664 = vdwg.mxu0
        %665 = vmatprep.subr.mxu0 0.0
        %v666 = vand.u32 %v294, 4294901760
        %v667 = vsub.f32 %v294, %v666
        %v668 = vand.u32 %v667, 4294901760
        %669 = vmatpush1.msra.mxu0 %v668
        %670 = vmatprep.subr.mxu0 0.0
        %v671 = vand.u32 %v295, 4294901760
        %v672 = vsub.f32 %v295, %v671
        %v673 = vand.u32 %v672, 4294901760
        %674 = vmatpush1.msra.mxu0 %v673
        %675 = vmatprep.subr.mxu0 0.0
        %v676 = vand.u32 %v296, 4294901760
        %v677 = vsub.f32 %v296, %v676
        %v678 = vand.u32 %v677, 4294901760
        %679 = vmatpush1.msra.mxu0 %v678
        %680 = vmatprep.subr.mxu0 0.0
        %v681 = vand.u32 %v297, 4294901760
        %v682 = vsub.f32 %v297, %v681
        %v683 = vand.u32 %v682, 4294901760
        %684 = vmatpush1.msra.mxu0 %v683
        %685 = vmatprep.subr.mxu0 0.0
        %686 = vmatpush1.msra.mxu0 0.0
        %687 = vmatprep.subr.mxu0 0.0
        %688 = vmatpush1.msra.mxu0 0.0
        %689 = vmatprep.subr.mxu0 0.0
        %690 = vmatpush1.msra.mxu0 0.0
        %691 = vmatprep.subr.mxu0 0.0
        %692 = vmatpush1.msra.mxu0 0.0
        %693 = vmatprep.subr.mxu0 0.0
        %694 = vmatpush1.msra.mxu0 0.0
        %695 = vmatprep.subr.mxu0 0.0
        %696 = vmatpush1.msra.mxu0 0.0
        %697 = vmatprep.subr.mxu0 0.0
        %698 = vmatpush1.msra.mxu0 0.0
        %699 = vmatprep.subr.mxu0 0.0
        %700 = vmatpush1.msra.mxu0 0.0
        %701 = vmatprep.subr.mxu0 0.0
        %702 = vmatpush1.msra.mxu0 0.0
        %703 = vmatprep.subr.mxu0 0.0
        %704 = vmatpush1.msra.mxu0 0.0
        %705 = vmatprep.subr.mxu0 0.0
        %706 = vmatpush1.msra.mxu0 0.0
        %707 = vmatprep.subr.mxu0 0.0
        %708 = vmatpush1.msra.mxu0 0.0
        %709 = vmatprep.subr.mxu0 0.0
        %710 = vmatpush1.msra.mxu0 0.0
        %711 = vmatprep.subr.mxu0 0.0
        %712 = vmatpush1.msra.mxu0 0.0
        %713 = vmatprep.subr.mxu0 0.0
        %714 = vmatpush1.msra.mxu0 0.0
        %715 = vmatprep.subr.mxu0 0.0
        %716 = vmatpush1.msra.mxu0 0.0
        %717 = vmatprep.subr.mxu0 0.0
        %718 = vmatpush1.msra.mxu0 0.0
        %719 = vmatprep.subr.mxu0 0.0
        %720 = vmatpush1.msra.mxu0 0.0
        %721 = vmatprep.subr.mxu0 0.0
        %722 = vmatpush1.msra.mxu0 0.0
        %723 = vmatprep.subr.mxu0 0.0
        %724 = vmatpush1.msra.mxu0 0.0
        %725 = vmatprep.subr.mxu0 0.0
        %726 = vmatpush1.msra.mxu0 0.0
        %727 = vmatprep.subr.mxu0 0.0
        %728 = vmatpush1.msra.mxu0 0.0
        %729 = vmatprep.subr.mxu0 0.0
        %730 = vmatpush1.msra.mxu0 0.0
        %731 = vmatprep.subr.mxu0 0.0
        %732 = vmatpush1.msra.mxu0 0.0
        %733 = vmatprep.subr.mxu0 0.0
        %734 = vmatpush1.msra.mxu0 0.0
        %735 = vmatprep.subr.mxu0 0.0
        %736 = vmatpush1.msra.mxu0 0.0
        %737 = vmatprep.subr.mxu0 0.0
        %738 = vmatpush1.msra.mxu0 0.0
        %739 = vmatprep.subr.mxu0 0.0
        %740 = vmatpush1.msra.mxu0 0.0
        %741 = vmatprep.mubr.f32.mxu0 0.0
        %v742 = vand.u32 %v302, 4294901760
        %743 = vmatmul.mubr.f32.gmra.mrb[0].mxu0 %v742
        %v744 = vpop.f32.mrb[0].mxu0
        %v745 = vadd.f32 %v654, %v744
        %v746 = vpop.f32.mrb[0].mxu0
        %747 = vmatprep.mubr.f32.mxu0 0.0
        %v748 = vand.u32 %v305, 4294901760
        %749 = vmatmul.mubr.f32.gmra.mrb[0].mxu0 %v748
        %v750 = vpop.f32.mrb[0].mxu0
        %v751 = vadd.f32 %v662, %v750
        %v752 = vpop.f32.mrb[0].mxu0
        %753 = vdwg.mxu0
        %754 = vmatprep.subr.mxu0 0.0
        %v755 = vand.u32 %v294, 4294901760
        %756 = vmatpush1.msra.mxu0 %v755
        %757 = vmatprep.subr.mxu0 0.0
        %v758 = vand.u32 %v295, 4294901760
        %759 = vmatpush1.msra.mxu0 %v758
        %760 = vmatprep.subr.mxu0 0.0
        %v761 = vand.u32 %v296, 4294901760
        %762 = vmatpush1.msra.mxu0 %v761
        %763 = vmatprep.subr.mxu0 0.0
        %v764 = vand.u32 %v297, 4294901760
        %765 = vmatpush1.msra.mxu0 %v764
        %766 = vmatprep.subr.mxu0 0.0
        %767 = vmatpush1.msra.mxu0 0.0
        %768 = vmatprep.subr.mxu0 0.0
        %769 = vmatpush1.msra.mxu0 0.0
        %770 = vmatprep.subr.mxu0 0.0
        %771 = vmatpush1.msra.mxu0 0.0
        %772 = vmatprep.subr.mxu0 0.0
        %773 = vmatpush1.msra.mxu0 0.0
        %774 = vmatprep.subr.mxu0 0.0
        %775 = vmatpush1.msra.mxu0 0.0
        %776 = vmatprep.subr.mxu0 0.0
        %777 = vmatpush1.msra.mxu0 0.0
        %778 = vmatprep.subr.mxu0 0.0
        %779 = vmatpush1.msra.mxu0 0.0
        %780 = vmatprep.subr.mxu0 0.0
        %781 = vmatpush1.msra.mxu0 0.0
        %782 = vmatprep.subr.mxu0 0.0
        %783 = vmatpush1.msra.mxu0 0.0
        %784 = vmatprep.subr.mxu0 0.0
        %785 = vmatpush1.msra.mxu0 0.0
        %786 = vmatprep.subr.mxu0 0.0
        %787 = vmatpush1.msra.mxu0 0.0
        %788 = vmatprep.subr.mxu0 0.0
        %789 = vmatpush1.msra.mxu0 0.0
        %790 = vmatprep.subr.mxu0 0.0
        %791 = vmatpush1.msra.mxu0 0.0
        %792 = vmatprep.subr.mxu0 0.0
        %793 = vmatpush1.msra.mxu0 0.0
        %794 = vmatprep.subr.mxu0 0.0
        %795 = vmatpush1.msra.mxu0 0.0
        %796 = vmatprep.subr.mxu0 0.0
        %797 = vmatpush1.msra.mxu0 0.0
        %798 = vmatprep.subr.mxu0 0.0
        %799 = vmatpush1.msra.mxu0 0.0
        %800 = vmatprep.subr.mxu0 0.0
        %801 = vmatpush1.msra.mxu0 0.0
        %802 = vmatprep.subr.mxu0 0.0
        %803 = vmatpush1.msra.mxu0 0.0
        %804 = vmatprep.subr.mxu0 0.0
        %805 = vmatpush1.msra.mxu0 0.0
        %806 = vmatprep.subr.mxu0 0.0
        %807 = vmatpush1.msra.mxu0 0.0
        %808 = vmatprep.subr.mxu0 0.0
        %809 = vmatpush1.msra.mxu0 0.0
        %810 = vmatprep.subr.mxu0 0.0
        %811 = vmatpush1.msra.mxu0 0.0
        %812 = vmatprep.subr.mxu0 0.0
        %813 = vmatpush1.msra.mxu0 0.0
        %814 = vmatprep.subr.mxu0 0.0
        %815 = vmatpush1.msra.mxu0 0.0
        %816 = vmatprep.subr.mxu0 0.0
        %817 = vmatpush1.msra.mxu0 0.0
        %818 = vmatprep.subr.mxu0 0.0
        %819 = vmatpush1.msra.mxu0 0.0
        %820 = vmatprep.subr.mxu0 0.0
        %821 = vmatpush1.msra.mxu0 0.0
        %822 = vmatprep.mubr.f32.mxu0 0.0
        %v823 = vand.u32 %v302, 4294901760
        %824 = vmatmul.mubr.f32.gmra.mrb[0].mxu0 %v823
        %v825 = vpop.f32.mrb[0].mxu0
        %v826 = vadd.f32 %v745, %v825
        %v827 = vpop.f32.mrb[0].mxu0
        %828 = vmatprep.mubr.f32.mxu0 0.0
        %v829 = vand.u32 %v305, 4294901760
        %830 = vmatmul.mubr.f32.gmra.mrb[0].mxu0 %v829
        %v831 = vpop.f32.mrb[0].mxu0
        %v832 = vadd.f32 %v751, %v831
        %v833 = vpop.f32.mrb[0].mxu0
        %834 = vdwg.mxu0
        %v835 = vld [vmem:[%s1] sm:$0xff]
        %v836 = vld [vmem:[%s1 + $0x8] sm:$0xff]
        %v837 = vld [vmem:[%s1 + $0x10] sm:$0xff]
        %v838 = vld [vmem:[%s1 + $0x18] sm:$0xff]
        %v840 = vsel %vm300, %v826, 0
        %v843 = vsel %vm300, %v832, 0
        %845 = vmatprep.subr.mxu0 0.0
        %v846 = vand.u32 %v835, 4294901760
        %847 = vmatpush1.msra.mxu0 %v846
        %848 = vmatprep.subr.mxu0 0.0
        %v849 = vand.u32 %v836, 4294901760
        %850 = vmatpush1.msra.mxu0 %v849
        %851 = vmatprep.subr.mxu0 0.0
        %v852 = vand.u32 %v837, 4294901760
        %853 = vmatpush1.msra.mxu0 %v852
        %854 = vmatprep.subr.mxu0 0.0
        %v855 = vand.u32 %v838, 4294901760
        %856 = vmatpush1.msra.mxu0 %v855
        %857 = vmatprep.subr.mxu0 0.0
        %858 = vmatpush1.msra.mxu0 0.0
        %859 = vmatprep.subr.mxu0 0.0
        %860 = vmatpush1.msra.mxu0 0.0
        %861 = vmatprep.subr.mxu0 0.0
        %862 = vmatpush1.msra.mxu0 0.0
        %863 = vmatprep.subr.mxu0 0.0
        %864 = vmatpush1.msra.mxu0 0.0
        %865 = vmatprep.subr.mxu0 0.0
        %866 = vmatpush1.msra.mxu0 0.0
        %867 = vmatprep.subr.mxu0 0.0
        %868 = vmatpush1.msra.mxu0 0.0
        %869 = vmatprep.subr.mxu0 0.0
        %870 = vmatpush1.msra.mxu0 0.0
        %871 = vmatprep.subr.mxu0 0.0
        %872 = vmatpush1.msra.mxu0 0.0
        %873 = vmatprep.subr.mxu0 0.0
        %874 = vmatpush1.msra.mxu0 0.0
        %875 = vmatprep.subr.mxu0 0.0
        %876 = vmatpush1.msra.mxu0 0.0
        %877 = vmatprep.subr.mxu0 0.0
        %878 = vmatpush1.msra.mxu0 0.0
        %879 = vmatprep.subr.mxu0 0.0
        %880 = vmatpush1.msra.mxu0 0.0
        %881 = vmatprep.subr.mxu0 0.0
        %882 = vmatpush1.msra.mxu0 0.0
        %883 = vmatprep.subr.mxu0 0.0
        %884 = vmatpush1.msra.mxu0 0.0
        %885 = vmatprep.subr.mxu0 0.0
        %886 = vmatpush1.msra.mxu0 0.0
        %887 = vmatprep.subr.mxu0 0.0
        %888 = vmatpush1.msra.mxu0 0.0
        %889 = vmatprep.subr.mxu0 0.0
        %890 = vmatpush1.msra.mxu0 0.0
        %891 = vmatprep.subr.mxu0 0.0
        %892 = vmatpush1.msra.mxu0 0.0
        %893 = vmatprep.subr.mxu0 0.0
        %894 = vmatpush1.msra.mxu0 0.0
        %895 = vmatprep.subr.mxu0 0.0
        %896 = vmatpush1.msra.mxu0 0.0
        %897 = vmatprep.subr.mxu0 0.0
        %898 = vmatpush1.msra.mxu0 0.0
        %899 = vmatprep.subr.mxu0 0.0
        %900 = vmatpush1.msra.mxu0 0.0
        %901 = vmatprep.subr.mxu0 0.0
        %902 = vmatpush1.msra.mxu0 0.0
        %903 = vmatprep.subr.mxu0 0.0
        %904 = vmatpush1.msra.mxu0 0.0
        %905 = vmatprep.subr.mxu0 0.0
        %906 = vmatpush1.msra.mxu0 0.0
        %907 = vmatprep.subr.mxu0 0.0
        %908 = vmatpush1.msra.mxu0 0.0
        %909 = vmatprep.subr.mxu0 0.0
        %910 = vmatpush1.msra.mxu0 0.0
        %911 = vmatprep.subr.mxu0 0.0
        %912 = vmatpush1.msra.mxu0 0.0
        %913 = vmatprep.mubr.f32.mxu0 0.0
        %v914 = vand.u32 %v840, 4294901760
        %v915 = vsub.f32 %v840, %v914
        %v916 = vand.u32 %v915, 4294901760
        %v917 = vsub.f32 %v915, %v916
        %v918 = vand.u32 %v917, 4294901760
        %919 = vmatmul.mubr.f32.gmra.mrb[0].mxu0 %v918
        %v920 = vpop.f32.mrb[0].mxu0
        %v921 = vadd.f32 0.0, %v920
        %v922 = vpop.f32.mrb[0].mxu0
        %923 = vmatprep.mubr.f32.mxu0 0.0
        %v924 = vand.u32 %v843, 4294901760
        %v925 = vsub.f32 %v843, %v924
        %v926 = vand.u32 %v925, 4294901760
        %v927 = vsub.f32 %v925, %v926
        %v928 = vand.u32 %v927, 4294901760
        %929 = vmatmul.mubr.f32.gmra.mrb[0].mxu0 %v928
        %v930 = vpop.f32.mrb[0].mxu0
        %v931 = vadd.f32 0.0, %v930
        %v932 = vpop.f32.mrb[0].mxu0
        %933 = vdwg.mxu0
        %934 = vmatprep.subr.mxu0 0.0
        %v935 = vand.u32 %v835, 4294901760
        %v936 = vsub.f32 %v835, %v935
        %v937 = vand.u32 %v936, 4294901760
        %v938 = vsub.f32 %v936, %v937
        %v939 = vand.u32 %v938, 4294901760
        %940 = vmatpush1.msra.mxu0 %v939
        %941 = vmatprep.subr.mxu0 0.0
        %v942 = vand.u32 %v836, 4294901760
        %v943 = vsub.f32 %v836, %v942
        %v944 = vand.u32 %v943, 4294901760
        %v945 = vsub.f32 %v943, %v944
        %v946 = vand.u32 %v945, 4294901760
        %947 = vmatpush1.msra.mxu0 %v946
        %948 = vmatprep.subr.mxu0 0.0
        %v949 = vand.u32 %v837, 4294901760
        %v950 = vsub.f32 %v837, %v949
        %v951 = vand.u32 %v950, 4294901760
        %v952 = vsub.f32 %v950, %v951
        %v953 = vand.u32 %v952, 4294901760
        %954 = vmatpush1.msra.mxu0 %v953
        %955 = vmatprep.subr.mxu0 0.0
        %v956 = vand.u32 %v838, 4294901760
        %v957 = vsub.f32 %v838, %v956
        %v958 = vand.u32 %v957, 4294901760
        %v959 = vsub.f32 %v957, %v958
        %v960 = vand.u32 %v959, 4294901760
        %961 = vmatpush1.msra.mxu0 %v960
        %962 = vmatprep.subr.mxu0 0.0
        %963 = vmatpush1.msra.mxu0 0.0
        %964 = vmatprep.subr.mxu0 0.0
        %965 = vmatpush1.msra.mxu0 0.0
        %966 = vmatprep.subr.mxu0 0.0
        %967 = vmatpush1.msra.mxu0 0.0
        %968 = vmatprep.subr.mxu0 0.0
        %969 = vmatpush1.msra.mxu0 0.0
        %970 = vmatprep.subr.mxu0 0.0
        %971 = vmatpush1.msra.mxu0 0.0
        %972 = vmatprep.subr.mxu0 0.0
        %973 = vmatpush1.msra.mxu0 0.0
        %974 = vmatprep.subr.mxu0 0.0
        %975 = vmatpush1.msra.mxu0 0.0
        %976 = vmatprep.subr.mxu0 0.0
        %977 = vmatpush1.msra.mxu0 0.0
        %978 = vmatprep.subr.mxu0 0.0
        %979 = vmatpush1.msra.mxu0 0.0
        %980 = vmatprep.subr.mxu0 0.0
        %981 = vmatpush1.msra.mxu0 0.0
        %982 = vmatprep.subr.mxu0 0.0
        %983 = vmatpush1.msra.mxu0 0.0
        %984 = vmatprep.subr.mxu0 0.0
        %985 = vmatpush1.msra.mxu0 0.0
        %986 = vmatprep.subr.mxu0 0.0
        %987 = vmatpush1.msra.mxu0 0.0
        %988 = vmatprep.subr.mxu0 0.0
        %989 = vmatpush1.msra.mxu0 0.0
        %990 = vmatprep.subr.mxu0 0.0
        %991 = vmatpush1.msra.mxu0 0.0
        %992 = vmatprep.subr.mxu0 0.0
        %993 = vmatpush1.msra.mxu0 0.0
        %994 = vmatprep.subr.mxu0 0.0
        %995 = vmatpush1.msra.mxu0 0.0
        %996 = vmatprep.subr.mxu0 0.0
        %997 = vmatpush1.msra.mxu0 0.0
        %998 = vmatprep.subr.mxu0 0.0
        %999 = vmatpush1.msra.mxu0 0.0
        %1000 = vmatprep.subr.mxu0 0.0
        %1001 = vmatpush1.msra.mxu0 0.0
        %1002 = vmatprep.subr.mxu0 0.0
        %1003 = vmatpush1.msra.mxu0 0.0
        %1004 = vmatprep.subr.mxu0 0.0
        %1005 = vmatpush1.msra.mxu0 0.0
        %1006 = vmatprep.subr.mxu0 0.0
        %1007 = vmatpush1.msra.mxu0 0.0
        %1008 = vmatprep.subr.mxu0 0.0
        %1009 = vmatpush1.msra.mxu0 0.0
        %1010 = vmatprep.subr.mxu0 0.0
        %1011 = vmatpush1.msra.mxu0 0.0
        %1012 = vmatprep.subr.mxu0 0.0
        %1013 = vmatpush1.msra.mxu0 0.0
        %1014 = vmatprep.subr.mxu0 0.0
        %1015 = vmatpush1.msra.mxu0 0.0
        %1016 = vmatprep.subr.mxu0 0.0
        %1017 = vmatpush1.msra.mxu0 0.0
        %1018 = vmatprep.mubr.f32.mxu0 0.0
        %v1019 = vand.u32 %v840, 4294901760
        %1020 = vmatmul.mubr.f32.gmra.mrb[0].mxu0 %v1019
        %v1021 = vpop.f32.mrb[0].mxu0
        %v1022 = vadd.f32 %v921, %v1021
        %v1023 = vpop.f32.mrb[0].mxu0
        %1024 = vmatprep.mubr.f32.mxu0 0.0
        %v1025 = vand.u32 %v843, 4294901760
        %1026 = vmatmul.mubr.f32.gmra.mrb[0].mxu0 %v1025
        %v1027 = vpop.f32.mrb[0].mxu0
        %v1028 = vadd.f32 %v931, %v1027
        %v1029 = vpop.f32.mrb[0].mxu0
        %1030 = vdwg.mxu0
        %1031 = vmatprep.subr.mxu0 0.0
        %v1032 = vand.u32 %v835, 4294901760
        %v1033 = vsub.f32 %v835, %v1032
        %1034 = vmatpush1.msra.mxu0 %v1033
        %1035 = vmatprep.subr.mxu0 0.0
        %v1036 = vand.u32 %v836, 4294901760
        %v1037 = vsub.f32 %v836, %v1036
        %1038 = vmatpush1.msra.mxu0 %v1037
        %1039 = vmatprep.subr.mxu0 0.0
        %v1040 = vand.u32 %v837, 4294901760
        %v1041 = vsub.f32 %v837, %v1040
        %1042 = vmatpush1.msra.mxu0 %v1041
        %1043 = vmatprep.subr.mxu0 0.0
        %v1044 = vand.u32 %v838, 4294901760
        %v1045 = vsub.f32 %v838, %v1044
        %1046 = vmatpush1.msra.mxu0 %v1045
        %1047 = vmatprep.subr.mxu0 0.0
        %1048 = vmatpush1.msra.mxu0 0.0
        %1049 = vmatprep.subr.mxu0 0.0
        %1050 = vmatpush1.msra.mxu0 0.0
        %1051 = vmatprep.subr.mxu0 0.0
        %1052 = vmatpush1.msra.mxu0 0.0
        %1053 = vmatprep.subr.mxu0 0.0
        %1054 = vmatpush1.msra.mxu0 0.0
        %1055 = vmatprep.subr.mxu0 0.0
        %1056 = vmatpush1.msra.mxu0 0.0
        %1057 = vmatprep.subr.mxu0 0.0
        %1058 = vmatpush1.msra.mxu0 0.0
        %1059 = vmatprep.subr.mxu0 0.0
        %1060 = vmatpush1.msra.mxu0 0.0
        %1061 = vmatprep.subr.mxu0 0.0
        %1062 = vmatpush1.msra.mxu0 0.0
        %1063 = vmatprep.subr.mxu0 0.0
        %1064 = vmatpush1.msra.mxu0 0.0
        %1065 = vmatprep.subr.mxu0 0.0
        %1066 = vmatpush1.msra.mxu0 0.0
        %1067 = vmatprep.subr.mxu0 0.0
        %1068 = vmatpush1.msra.mxu0 0.0
        %1069 = vmatprep.subr.mxu0 0.0
        %1070 = vmatpush1.msra.mxu0 0.0
        %1071 = vmatprep.subr.mxu0 0.0
        %1072 = vmatpush1.msra.mxu0 0.0
        %1073 = vmatprep.subr.mxu0 0.0
        %1074 = vmatpush1.msra.mxu0 0.0
        %1075 = vmatprep.subr.mxu0 0.0
        %1076 = vmatpush1.msra.mxu0 0.0
        %1077 = vmatprep.subr.mxu0 0.0
        %1078 = vmatpush1.msra.mxu0 0.0
        %1079 = vmatprep.subr.mxu0 0.0
        %1080 = vmatpush1.msra.mxu0 0.0
        %1081 = vmatprep.subr.mxu0 0.0
        %1082 = vmatpush1.msra.mxu0 0.0
        %1083 = vmatprep.subr.mxu0 0.0
        %1084 = vmatpush1.msra.mxu0 0.0
        %1085 = vmatprep.subr.mxu0 0.0
        %1086 = vmatpush1.msra.mxu0 0.0
        %1087 = vmatprep.subr.mxu0 0.0
        %1088 = vmatpush1.msra.mxu0 0.0
        %1089 = vmatprep.subr.mxu0 0.0
        %1090 = vmatpush1.msra.mxu0 0.0
        %1091 = vmatprep.subr.mxu0 0.0
        %1092 = vmatpush1.msra.mxu0 0.0
        %1093 = vmatprep.subr.mxu0 0.0
        %1094 = vmatpush1.msra.mxu0 0.0
        %1095 = vmatprep.subr.mxu0 0.0
        %1096 = vmatpush1.msra.mxu0 0.0
        %1097 = vmatprep.subr.mxu0 0.0
        %1098 = vmatpush1.msra.mxu0 0.0
        %1099 = vmatprep.subr.mxu0 0.0
        %1100 = vmatpush1.msra.mxu0 0.0
        %1101 = vmatprep.subr.mxu0 0.0
        %1102 = vmatpush1.msra.mxu0 0.0
        %1103 = vmatprep.mubr.f32.mxu0 0.0
        %v1104 = vand.u32 %v840, 4294901760
        %v1105 = vsub.f32 %v840, %v1104
        %1106 = vmatmul.mubr.f32.gmra.mrb[0].mxu0 %v1105
        %v1107 = vpop.f32.mrb[0].mxu0
        %v1108 = vadd.f32 %v1022, %v1107
        %v1109 = vpop.f32.mrb[0].mxu0
        %1110 = vmatprep.mubr.f32.mxu0 0.0
        %v1111 = vand.u32 %v843, 4294901760
        %v1112 = vsub.f32 %v843, %v1111
        %1113 = vmatmul.mubr.f32.gmra.mrb[0].mxu0 %v1112
        %v1114 = vpop.f32.mrb[0].mxu0
        %v1115 = vadd.f32 %v1028, %v1114
        %v1116 = vpop.f32.mrb[0].mxu0
        %1117 = vdwg.mxu0
        %1118 = vmatprep.subr.mxu0 0.0
        %v1119 = vand.u32 %v835, 4294901760
        %1120 = vmatpush1.msra.mxu0 %v1119
        %1121 = vmatprep.subr.mxu0 0.0
        %v1122 = vand.u32 %v836, 4294901760
        %1123 = vmatpush1.msra.mxu0 %v1122
        %1124 = vmatprep.subr.mxu0 0.0
        %v1125 = vand.u32 %v837, 4294901760
        %1126 = vmatpush1.msra.mxu0 %v1125
        %1127 = vmatprep.subr.mxu0 0.0
        %v1128 = vand.u32 %v838, 4294901760
        %1129 = vmatpush1.msra.mxu0 %v1128
        %1130 = vmatprep.subr.mxu0 0.0
        %1131 = vmatpush1.msra.mxu0 0.0
        %1132 = vmatprep.subr.mxu0 0.0
        %1133 = vmatpush1.msra.mxu0 0.0
        %1134 = vmatprep.subr.mxu0 0.0
        %1135 = vmatpush1.msra.mxu0 0.0
        %1136 = vmatprep.subr.mxu0 0.0
        %1137 = vmatpush1.msra.mxu0 0.0
        %1138 = vmatprep.subr.mxu0 0.0
        %1139 = vmatpush1.msra.mxu0 0.0
        %1140 = vmatprep.subr.mxu0 0.0
        %1141 = vmatpush1.msra.mxu0 0.0
        %1142 = vmatprep.subr.mxu0 0.0
        %1143 = vmatpush1.msra.mxu0 0.0
        %1144 = vmatprep.subr.mxu0 0.0
        %1145 = vmatpush1.msra.mxu0 0.0
        %1146 = vmatprep.subr.mxu0 0.0
        %1147 = vmatpush1.msra.mxu0 0.0
        %1148 = vmatprep.subr.mxu0 0.0
        %1149 = vmatpush1.msra.mxu0 0.0
        %1150 = vmatprep.subr.mxu0 0.0
        %1151 = vmatpush1.msra.mxu0 0.0
        %1152 = vmatprep.subr.mxu0 0.0
        %1153 = vmatpush1.msra.mxu0 0.0
        %1154 = vmatprep.subr.mxu0 0.0
        %1155 = vmatpush1.msra.mxu0 0.0
        %1156 = vmatprep.subr.mxu0 0.0
        %1157 = vmatpush1.msra.mxu0 0.0
        %1158 = vmatprep.subr.mxu0 0.0
        %1159 = vmatpush1.msra.mxu0 0.0
        %1160 = vmatprep.subr.mxu0 0.0
        %1161 = vmatpush1.msra.mxu0 0.0
        %1162 = vmatprep.subr.mxu0 0.0
        %1163 = vmatpush1.msra.mxu0 0.0
        %1164 = vmatprep.subr.mxu0 0.0
        %1165 = vmatpush1.msra.mxu0 0.0
        %1166 = vmatprep.subr.mxu0 0.0
        %1167 = vmatpush1.msra.mxu0 0.0
        %1168 = vmatprep.subr.mxu0 0.0
        %1169 = vmatpush1.msra.mxu0 0.0
        %1170 = vmatprep.subr.mxu0 0.0
        %1171 = vmatpush1.msra.mxu0 0.0
        %1172 = vmatprep.subr.mxu0 0.0
        %1173 = vmatpush1.msra.mxu0 0.0
        %1174 = vmatprep.subr.mxu0 0.0
        %1175 = vmatpush1.msra.mxu0 0.0
        %1176 = vmatprep.subr.mxu0 0.0
        %1177 = vmatpush1.msra.mxu0 0.0
        %1178 = vmatprep.subr.mxu0 0.0
        %1179 = vmatpush1.msra.mxu0 0.0
        %1180 = vmatprep.subr.mxu0 0.0
        %1181 = vmatpush1.msra.mxu0 0.0
        %1182 = vmatprep.subr.mxu0 0.0
        %1183 = vmatpush1.msra.mxu0 0.0
        %1184 = vmatprep.subr.mxu0 0.0
        %1185 = vmatpush1.msra.mxu0 0.0
        %1186 = vmatprep.mubr.f32.mxu0 0.0
        %v1187 = vand.u32 %v840, 4294901760
        %v1188 = vsub.f32 %v840, %v1187
        %v1189 = vand.u32 %v1188, 4294901760
        %1190 = vmatmul.mubr.f32.gmra.mrb[0].mxu0 %v1189
        %v1191 = vpop.f32.mrb[0].mxu0
        %v1192 = vadd.f32 %v1108, %v1191
        %v1193 = vpop.f32.mrb[0].mxu0
        %1194 = vmatprep.mubr.f32.mxu0 0.0
        %v1195 = vand.u32 %v843, 4294901760
        %v1196 = vsub.f32 %v843, %v1195
        %v1197 = vand.u32 %v1196, 4294901760
        %1198 = vmatmul.mubr.f32.gmra.mrb[0].mxu0 %v1197
        %v1199 = vpop.f32.mrb[0].mxu0
        %v1200 = vadd.f32 %v1115, %v1199
        %v1201 = vpop.f32.mrb[0].mxu0
        %1202 = vdwg.mxu0
        %1203 = vmatprep.subr.mxu0 0.0
        %v1204 = vand.u32 %v835, 4294901760
        %v1205 = vsub.f32 %v835, %v1204
        %v1206 = vand.u32 %v1205, 4294901760
        %1207 = vmatpush1.msra.mxu0 %v1206
        %1208 = vmatprep.subr.mxu0 0.0
        %v1209 = vand.u32 %v836, 4294901760
        %v1210 = vsub.f32 %v836, %v1209
        %v1211 = vand.u32 %v1210, 4294901760
        %1212 = vmatpush1.msra.mxu0 %v1211
        %1213 = vmatprep.subr.mxu0 0.0
        %v1214 = vand.u32 %v837, 4294901760
        %v1215 = vsub.f32 %v837, %v1214
        %v1216 = vand.u32 %v1215, 4294901760
        %1217 = vmatpush1.msra.mxu0 %v1216
        %1218 = vmatprep.subr.mxu0 0.0
        %v1219 = vand.u32 %v838, 4294901760
        %v1220 = vsub.f32 %v838, %v1219
        %v1221 = vand.u32 %v1220, 4294901760
        %1222 = vmatpush1.msra.mxu0 %v1221
        %1223 = vmatprep.subr.mxu0 0.0
        %1224 = vmatpush1.msra.mxu0 0.0
        %1225 = vmatprep.subr.mxu0 0.0
        %1226 = vmatpush1.msra.mxu0 0.0
        %1227 = vmatprep.subr.mxu0 0.0
        %1228 = vmatpush1.msra.mxu0 0.0
        %1229 = vmatprep.subr.mxu0 0.0
        %1230 = vmatpush1.msra.mxu0 0.0
        %1231 = vmatprep.subr.mxu0 0.0
        %1232 = vmatpush1.msra.mxu0 0.0
        %1233 = vmatprep.subr.mxu0 0.0
        %1234 = vmatpush1.msra.mxu0 0.0
        %1235 = vmatprep.subr.mxu0 0.0
        %1236 = vmatpush1.msra.mxu0 0.0
        %1237 = vmatprep.subr.mxu0 0.0
        %1238 = vmatpush1.msra.mxu0 0.0
        %1239 = vmatprep.subr.mxu0 0.0
        %1240 = vmatpush1.msra.mxu0 0.0
        %1241 = vmatprep.subr.mxu0 0.0
        %1242 = vmatpush1.msra.mxu0 0.0
        %1243 = vmatprep.subr.mxu0 0.0
        %1244 = vmatpush1.msra.mxu0 0.0
        %1245 = vmatprep.subr.mxu0 0.0
        %1246 = vmatpush1.msra.mxu0 0.0
        %1247 = vmatprep.subr.mxu0 0.0
        %1248 = vmatpush1.msra.mxu0 0.0
        %1249 = vmatprep.subr.mxu0 0.0
        %1250 = vmatpush1.msra.mxu0 0.0
        %1251 = vmatprep.subr.mxu0 0.0
        %1252 = vmatpush1.msra.mxu0 0.0
        %1253 = vmatprep.subr.mxu0 0.0
        %1254 = vmatpush1.msra.mxu0 0.0
        %1255 = vmatprep.subr.mxu0 0.0
        %1256 = vmatpush1.msra.mxu0 0.0
        %1257 = vmatprep.subr.mxu0 0.0
        %1258 = vmatpush1.msra.mxu0 0.0
        %1259 = vmatprep.subr.mxu0 0.0
        %1260 = vmatpush1.msra.mxu0 0.0
        %1261 = vmatprep.subr.mxu0 0.0
        %1262 = vmatpush1.msra.mxu0 0.0
        %1263 = vmatprep.subr.mxu0 0.0
        %1264 = vmatpush1.msra.mxu0 0.0
        %1265 = vmatprep.subr.mxu0 0.0
        %1266 = vmatpush1.msra.mxu0 0.0
        %1267 = vmatprep.subr.mxu0 0.0
        %1268 = vmatpush1.msra.mxu0 0.0
        %1269 = vmatprep.subr.mxu0 0.0
        %1270 = vmatpush1.msra.mxu0 0.0
        %1271 = vmatprep.subr.mxu0 0.0
        %1272 = vmatpush1.msra.mxu0 0.0
        %1273 = vmatprep.subr.mxu0 0.0
        %1274 = vmatpush1.msra.mxu0 0.0
        %1275 = vmatprep.subr.mxu0 0.0
        %1276 = vmatpush1.msra.mxu0 0.0
        %1277 = vmatprep.subr.mxu0 0.0
        %1278 = vmatpush1.msra.mxu0 0.0
        %1279 = vmatprep.mubr.f32.mxu0 0.0
        %v1280 = vand.u32 %v840, 4294901760
        %1281 = vmatmul.mubr.f32.gmra.mrb[0].mxu0 %v1280
        %v1282 = vpop.f32.mrb[0].mxu0
        %v1283 = vadd.f32 %v1192, %v1282
        %v1284 = vpop.f32.mrb[0].mxu0
        %1285 = vmatprep.mubr.f32.mxu0 0.0
        %v1286 = vand.u32 %v843, 4294901760
        %1287 = vmatmul.mubr.f32.gmra.mrb[0].mxu0 %v1286
        %v1288 = vpop.f32.mrb[0].mxu0
        %v1289 = vadd.f32 %v1200, %v1288
        %v1290 = vpop.f32.mrb[0].mxu0
        %1291 = vdwg.mxu0
        %1292 = vmatprep.subr.mxu0 0.0
        %v1293 = vand.u32 %v835, 4294901760
        %1294 = vmatpush1.msra.mxu0 %v1293
        %1295 = vmatprep.subr.mxu0 0.0
        %v1296 = vand.u32 %v836, 4294901760
        %1297 = vmatpush1.msra.mxu0 %v1296
        %1298 = vmatprep.subr.mxu0 0.0
        %v1299 = vand.u32 %v837, 4294901760
        %1300 = vmatpush1.msra.mxu0 %v1299
        %1301 = vmatprep.subr.mxu0 0.0
        %v1302 = vand.u32 %v838, 4294901760
        %1303 = vmatpush1.msra.mxu0 %v1302
        %1304 = vmatprep.subr.mxu0 0.0
        %1305 = vmatpush1.msra.mxu0 0.0
        %1306 = vmatprep.subr.mxu0 0.0
        %1307 = vmatpush1.msra.mxu0 0.0
        %1308 = vmatprep.subr.mxu0 0.0
        %1309 = vmatpush1.msra.mxu0 0.0
        %1310 = vmatprep.subr.mxu0 0.0
        %1311 = vmatpush1.msra.mxu0 0.0
        %1312 = vmatprep.subr.mxu0 0.0
        %1313 = vmatpush1.msra.mxu0 0.0
        %1314 = vmatprep.subr.mxu0 0.0
        %1315 = vmatpush1.msra.mxu0 0.0
        %1316 = vmatprep.subr.mxu0 0.0
        %1317 = vmatpush1.msra.mxu0 0.0
        %1318 = vmatprep.subr.mxu0 0.0
        %1319 = vmatpush1.msra.mxu0 0.0
        %1320 = vmatprep.subr.mxu0 0.0
        %1321 = vmatpush1.msra.mxu0 0.0
        %1322 = vmatprep.subr.mxu0 0.0
        %1323 = vmatpush1.msra.mxu0 0.0
        %1324 = vmatprep.subr.mxu0 0.0
        %1325 = vmatpush1.msra.mxu0 0.0
        %1326 = vmatprep.subr.mxu0 0.0
        %1327 = vmatpush1.msra.mxu0 0.0
        %1328 = vmatprep.subr.mxu0 0.0
        %1329 = vmatpush1.msra.mxu0 0.0
        %1330 = vmatprep.subr.mxu0 0.0
        %1331 = vmatpush1.msra.mxu0 0.0
        %1332 = vmatprep.subr.mxu0 0.0
        %1333 = vmatpush1.msra.mxu0 0.0
        %1334 = vmatprep.subr.mxu0 0.0
        %1335 = vmatpush1.msra.mxu0 0.0
        %1336 = vmatprep.subr.mxu0 0.0
        %1337 = vmatpush1.msra.mxu0 0.0
        %1338 = vmatprep.subr.mxu0 0.0
        %1339 = vmatpush1.msra.mxu0 0.0
        %1340 = vmatprep.subr.mxu0 0.0
        %1341 = vmatpush1.msra.mxu0 0.0
        %1342 = vmatprep.subr.mxu0 0.0
        %1343 = vmatpush1.msra.mxu0 0.0
        %1344 = vmatprep.subr.mxu0 0.0
        %1345 = vmatpush1.msra.mxu0 0.0
        %1346 = vmatprep.subr.mxu0 0.0
        %1347 = vmatpush1.msra.mxu0 0.0
        %1348 = vmatprep.subr.mxu0 0.0
        %1349 = vmatpush1.msra.mxu0 0.0
        %1350 = vmatprep.subr.mxu0 0.0
        %1351 = vmatpush1.msra.mxu0 0.0
        %1352 = vmatprep.subr.mxu0 0.0
        %1353 = vmatpush1.msra.mxu0 0.0
        %1354 = vmatprep.subr.mxu0 0.0
        %1355 = vmatpush1.msra.mxu0 0.0
        %1356 = vmatprep.subr.mxu0 0.0
        %1357 = vmatpush1.msra.mxu0 0.0
        %1358 = vmatprep.subr.mxu0 0.0
        %1359 = vmatpush1.msra.mxu0 0.0
        %1360 = vmatprep.mubr.f32.mxu0 0.0
        %v1361 = vand.u32 %v840, 4294901760
        %1362 = vmatmul.mubr.f32.gmra.mrb[0].mxu0 %v1361
        %v1363 = vpop.f32.mrb[0].mxu0
        %v1364 = vadd.f32 %v1283, %v1363
        %v1365 = vpop.f32.mrb[0].mxu0
        %1366 = vmatprep.mubr.f32.mxu0 0.0
        %v1367 = vand.u32 %v843, 4294901760
        %1368 = vmatmul.mubr.f32.gmra.mrb[0].mxu0 %v1367
        %v1369 = vpop.f32.mrb[0].mxu0
        %v1370 = vadd.f32 %v1289, %v1369
        %v1371 = vpop.f32.mrb[0].mxu0
        %1372 = vdwg.mxu0
        %v1373 = vld [vmem:[%s230] sm:$0xff]
        %v1374 = vld [vmem:[%s230 + $0x8] sm:$0xff]
        %v1375 = vsub.f32 %v1373, %v1364
        %v1376 = vsub.f32 %v1374, %v1370
        %v1377 = vmul.f32 %v1375, %v1375
        %v1378 = vmul.f32 %v1376, %v1376
        %vm1379 = vcmask 130048
        %v1380 = vsel %vm1379, %v1377, 0.0
        %1381 = vadd.xlane.f32.xlu0 %v1380
        %v1382 = vpop.xlane.xlu0 %1381
        %v1383 = vsel %vm1379, %v1378, 0.0
        %1384 = vadd.xlane.f32.xlu0 %v1383
        %v1385 = vpop.xlane.xlu0 %1384
        %v1386 = vadd.f32 %v1382, %v1385
        %v1387 = vrot.slane %v1386, 4
        %v1388 = vadd.f32 %v1386, %v1387
        %v1389 = vrot.slane %v1388, 2
        %v1390 = vadd.f32 %v1388, %v1389
        %v1391 = vrot.slane %v1390, 1
        %v1392 = vadd.f32 %v1390, %v1391
        %v1393 = vadd.f32 %v1392, 0.0
        %vm1394 = vcmask 0
        %1395 = vst.msk [vmem:[%s233] sm:$0x1] %vm1394, %v1393
        %p1396 = scmp.lt.s32.totalorder %s18, 1
        %s1397 = scalar_select %p1396, %s18, 1
        %s1398 = scalar_lea.vmem %s4, %s1397
        // Predicated region
        $region41: #{tpu_custom_call.1} parent=35 // pred_check
          %p1399 = pneg %p130
        $region42: #{tpu_custom_call.1} parent=35 // pred_check_branch
          %1401 = sbr.rel (%p1399) target = $region44
        $region43: #{tpu_custom_call.1} parent=35 // pred_region
          _
        $region44: #{tpu_custom_call.1} parent=35 // pred_fallthru
          _
      $region36: #{tpu_custom_call.1} parent=5 // pred_fallthru
        _
      %p1402 = scmp.le.s32.totalorder 2, %s13
      // Predicated region
      $region45: #{tpu_custom_call.1} parent=5 // pred_check
        %p1403 = pneg %p1402
      $region46: #{tpu_custom_call.1} parent=5 // pred_check_branch
        %1405 = sbr.rel (%p1403) target = $region48
      $region47: #{tpu_custom_call.1} parent=5 // pred_region
        %s1406 = ssub.s32 %s13, 2
        // Predicated region
        $region49: #{tpu_custom_call.1} parent=47 // pred_check
          %p1407 = pneg %p136
        $region50: #{tpu_custom_call.1} parent=47 // pred_check_branch
          %1409 = sbr.rel (%p1407) target = $region52
        $region51: #{tpu_custom_call.1} parent=47 // pred_region
          %p1410 = scmp.lt.s32.totalorder %s19, 1
          %s1411 = scalar_select %p1410, %s19, 1
          %s1412 = scalar_lea.vmem %s4, %s1411
        $region52: #{tpu_custom_call.1} parent=47 // pred_fallthru
          _
      $region48: #{tpu_custom_call.1} parent=5 // pred_fallthru
        _
    $region6: #{tpu_custom_call.1} parent=1 // loop_footer
      %s17 = sadd.s32 1, %s13
    $region7: #{tpu_custom_call.1} parent=1 // loop_footer_branch
      %12 = sbr.rel target = $region3
    $region8: #{tpu_custom_call.1} parent=1 // loop_exit
      _
    %1413 = vsyncpa [#allocation3], 1
    %s1414 = scalar_lea.sflag [#allocation3], 1
    %1415 = vsyncpa %s1414, 1

</llo_original>
